<compile_context>
chip_gen: v7x
topology: tpu7x:2x2x1
jax: 0.10.0
libtpu: 0.0.40
codegen_flags: <defaults>
</compile_context>

<pallas_src>
import functools
import math

import numpy as np

import jax
import jax.numpy as jnp
from jax import lax
from jax.experimental import pallas as pl
from jax.experimental.pallas import tpu as pltpu


# ---------------------------------------------------------------------------
# Trace-time constants (numpy -> baked literals; DMA'd once via constant maps)
# ---------------------------------------------------------------------------
def _same_tile_matrix(n, tile):
    """(n, n) 0/1 matrix A with A[i, j] = 1 iff i//tile == j//tile."""
    idx = np.arange(n) // tile
    return (idx[:, None] == idx[None, :]).astype(np.float32)


def _tensorcores_per_chip():
    """Best-effort TensorCores-per-chip count (v7x / megacore chips expose 2)."""
    try:
        kind = jax.devices()[0].device_kind.lower()
    except Exception:
        return 1
    return 2 if any(tag in kind for tag in ("v7", "7x", "v4", "v5p")) else 1


# ---------------------------------------------------------------------------
# Fused Pallas kernel: QKV projection + tile pruning + WO row pruning + the
# full matmul chain, entirely in VMEM/vregs for one (rows, Din) slab.
# ---------------------------------------------------------------------------
def _fused_mha_secondary_kernel(x_ref, w_ref, b_ref, wo_ref,
                                arow_ref, acol_ref, bpool_ref, bpoolnd_ref,
                                o_ref, *, seq_len, keep_min, mask_chain):
    f32 = jnp.float32
    bt = (((1,), (1,)), ((), ()))                # A @ B^T (contract last dims)

    x = x_ref[...]                               # (R, Din)
    e = acol_ref.shape[0]                        # head_dim == embed_dim (H == 1)

    # --- fused QKV projection: ONE MXU pass against (Din, 3E=96), then static
    #     lane slices 0:E / E:2E / 2E:3E inside a single 128-lane vreg.
    qkv = jnp.dot(x, w_ref[...], preferred_element_type=f32) + b_ref[...]   # (R, 3E)
    q = qkv[:, 0:e]
    k = qkv[:, e:2 * e]
    v = qkv[:, 2 * e:3 * e]

    a_row = arow_ref[...]                        # (R, R) 2-row pair pooling (hoisted const)
    a_col = acol_ref[...]                        # (E, E) 2-col pair pooling (hoisted const)
    bpool = bpool_ref[...]                       # (R, R) same-batch-slab indicator
    bpool_nd = bpoolnd_ref[...]                  # bpool with zero diagonal
    inv_tile_cnt = 1.0 / float(seq_len * e)

    # --- 2x2 tile pruning with per-batch mean-score threshold (all f32 so the
    #     data-dependent mask decisions cannot flip vs. the f32 reference).
    # TODO(synk): exact ET tile_pruning source not provided; deterministic
    # magnitude-based approximation (same formula as the in-file JAX reference).
    def tile_prune(t, scale):
        mag = jnp.abs(t)
        pooled = jnp.dot(a_row, mag, preferred_element_type=f32)        # row-pair sums
        score = jnp.dot(pooled, a_col, preferred_element_type=f32)      # 2x2 tile sums (R, E)
        batch_sum = jnp.dot(bpool, score, preferred_element_type=f32)   # per-row batch-slab sums
        thresh = jnp.sum(batch_sum, axis=-1, keepdims=True) * inv_tile_cnt
        # `scale` folded into the 0/1 mask -> no extra VPU pass for 1/sqrt(d_k)
        return t * jnp.where(score >= thresh, f32(scale), f32(0.0))

    inv_sqrt_dk = 1.0 / math.sqrt(e)             # d_k == head_dim == E
    qp = tile_prune(q, inv_sqrt_dk)              # pruned WQ, pre-scaled
    kp = tile_prune(k, 1.0)                      # pruned WK

    # --- WO row pruning, in-kernel and sort-free: keep row i iff
    #       1 + #{j != i in same batch : |wo_j|^2 <= |wo_i|^2} >= S//2 + 1,
    #     exactly the sort-based `norm_i >= sorted(norms)[S//2]` test (sqrt is
    #     monotone and skipped).  Self-count added explicitly (diagonal excluded
    #     via bpool_nd) so summation-order rounding cannot flip a row's own rank.
    # TODO(synk): exact ET row_pruning_with_zeros source not provided; same
    # bottom-half-by-L2-norm approximation as the in-file JAX reference.
    wo = wo_ref[...]                                                    # (R, hd)
    wsq = wo * wo
    nsq_i = jnp.sum(wsq, axis=-1, keepdims=True)                        # (R, 1)
    nsq_j = lax.dot_general(jnp.ones(wsq.shape, f32), wsq, bt,
                            preferred_element_type=f32)                 # (R, R): [i, j] = |wo_j|^2
    le = (nsq_j <= nsq_i).astype(f32)
    count = jnp.sum(le * bpool_nd, axis=-1, keepdims=True) + f32(1.0)   # within-batch rank
    wo_p = wo * jnp.where(count >= f32(keep_min), f32(1.0), f32(0.0))

    # --- matmul chain of the reference forward (f32 MXU accumulation).  When
    #     several batches share this block (collapsed grid on 1-TC chips) the
    #     (R, R) intermediates are masked block-diagonal with `bpool` so no
    #     cross-batch terms leak into the later contractions.
    q_ = lax.dot_general(x, qp, bt, preferred_element_type=f32)          # (R, R), pre-scaled
    k_ = lax.dot_general(x, kp, bt, preferred_element_type=f32)          # (R, R)
    pre = lax.dot_general(v, wo_p, bt, preferred_element_type=f32)       # (R, R)
    if mask_chain:
        q_ = q_ * bpool
        k_ = k_ * bpool
        pre = pre * bpool
    # TODO(synk): scale_and_multiply source not provided; implemented as a pure
    # scaled matmul (no softmax), matching the call site in the reference.
    sv = lax.dot_general(q_, k_, bt, preferred_element_type=f32)         # (R, R)
    preout = jnp.dot(pre, x, preferred_element_type=f32)                 # (R, Din)
    out = jnp.dot(sv, preout, preferred_element_type=f32)                # (R, Din)

    o_ref[...] = out.astype(o_ref.dtype)


def fused_forward_pallas(x2, w_qkv, b2, wo2, *, batch, seq_len, head_dim):
    rows_total, input_dim = x2.shape
    three_e = w_qkv.shape[1]
    e = three_e // 3

    # Grid policy (perf review): one batch per "parallel" grid step on multi-TC
    # chips (v7x / megacore) so each TensorCore takes a batch; collapse every
    # batch into a single step on single-TC chips (v5e / v6e) so the ~0.35 us
    # per-step overhead is paid once.  Same kernel body serves both.
    per_batch = _tensorcores_per_chip() > 1 and batch > 1
    g = 1 if per_batch else batch                 # batches per grid step
    rows = g * seq_len
    n_steps = batch // g

    # Hoisted trace-time constants (numpy literals, DMA'd once).
    a_row = _same_tile_matrix(rows, 2)                     # 2-row pair pooling
    a_col = _same_tile_matrix(e, 2)                        # 2-col pair pooling
    bpool = _same_tile_matrix(rows, seq_len)               # same-batch slab
    bpool_nd = bpool - np.eye(rows, dtype=np.float32)      # ... minus diagonal

    kernel = functools.partial(
        _fused_mha_secondary_kernel,
        seq_len=seq_len, keep_min=seq_len // 2 + 1, mask_chain=(g > 1))

    # Total resident footprint (x, weights, constants, output, double buffers)
    # is a few tens of KiB — far under VMEM on v5e/v6e (128 MiB) and v7x
    # (64 MiB), so no vmem_limit override or block-size reduction is needed.
    return pl.pallas_call(
        kernel,
        out_shape=jax.ShapeDtypeStruct((rows_total, input_dim), x2.dtype),
        grid_spec=pltpu.PrefetchScalarGridSpec(
            num_scalar_prefetch=0,
            grid=(n_steps,),
            in_specs=[
                pl.BlockSpec((rows, input_dim), lambda i: (i, 0)),     # x rows
                pl.BlockSpec((input_dim, three_e), lambda i: (0, 0)),  # fused QKV weight (once)
                pl.BlockSpec((1, three_e), lambda i: (0, 0)),          # QKV bias, 2-D (once)
                pl.BlockSpec((rows, head_dim), lambda i: (i, 0)),      # random WO rows
                pl.BlockSpec((rows, rows), lambda i: (0, 0)),          # row-pair pooling const
                pl.BlockSpec((e, e), lambda i: (0, 0)),                # col-pair pooling const
                pl.BlockSpec((rows, rows), lambda i: (0, 0)),          # same-batch const
                pl.BlockSpec((rows, rows), lambda i: (0, 0)),          # same-batch minus eye
            ],
            out_specs=pl.BlockSpec((rows, input_dim), lambda i: (i, 0)),
        ),
        compiler_params=pltpu.CompilerParams(
            dimension_semantics=("parallel",) if n_steps > 1 else ("arbitrary",),
        ),
    )(x2, w_qkv, b2, wo2, a_row, a_col, bpool, bpool_nd)


# ---------------------------------------------------------------------------
# Forward pass: single fused Pallas kernel on the hot path (no wrapper-side
# pruning, sorting, or weight re-layout — only contiguous metadata reshapes).
# ---------------------------------------------------------------------------
def multihead_attention_secondary(x, params, num_heads):
    w_qkv, b_qkv, wo_rand, bias_rand = params
    del bias_rand  # the approximated tile_pruning ignores the random bias tensor
    B, S, Din = x.shape
    three_e = w_qkv.shape[1]
    E = three_e // 3
    hd = E // num_heads
    assert num_heads == 1 and hd == Din, (
        "reference forward is only shape-consistent for H==1, head_dim==input_dim")

    x2 = x.reshape(B * S, Din)          # contiguous, metadata-only
    wo2 = wo_rand.reshape(B * S, hd)    # contiguous, metadata-only
    b2 = b_qkv.reshape(1, three_e)      # 2-D bias block

    out2 = fused_forward_pallas(x2, w_qkv, b2, wo2,
                                batch=B, seq_len=S, head_dim=hd)
    return out2.reshape(B, S, Din)      # == x.shape


# ---------------------------------------------------------------------------
# Pure-JAX reference mirroring the PyTorch forward line-by-line
# ---------------------------------------------------------------------------
def _tile_pool_matrix_jnp(n, tile):
    return jnp.asarray(_same_tile_matrix(n, tile))


def tile_pruning(t, bias, tile_h, tile_w, milesone=True):
    # TODO(synk): exact ET tile_pruning source not provided; magnitude-based
    # tile mask keeping tiles with >= mean |.| tile score (same as the kernel).
    del bias, milesone
    B, H, S, D = t.shape
    a_row = _tile_pool_matrix_jnp(S, tile_h)
    a_col = _tile_pool_matrix_jnp(D, tile_w)
    mag = jnp.abs(t)
    pooled = jnp.matmul(a_row, mag)
    score = jnp.matmul(pooled, a_col)
    thresh = jnp.sum(score, axis=(-2, -1), keepdims=True) * (1.0 / (S * D))
    return t * jnp.where(score >= thresh, 1.0, 0.0).astype(t.dtype)


def row_pruning_with_zeros(w, num):
    # TODO(synk): exact ET row_pruning_with_zeros source not provided; zero the
    # bottom-1/num rows (by L2 norm) of each (S, D) matrix (same as the kernel).
    B, H, S, D = w.shape
    norms = jnp.sqrt(jnp.sum(w * w, axis=-1))
    thresh = jnp.sort(norms, axis=-1)[..., S // num]
    mask = (norms >= thresh[..., None])[..., None]
    return w * mask.astype(w.dtype)


def reference_forward(x, params, num_heads):
    w_qkv, b_qkv, wo_rand, bias_rand = params
    B, S, Din = x.shape
    E = w_qkv.shape[1] // 3
    hd = E // num_heads

    qkv = x @ w_qkv + b_qkv
    qkv = jnp.transpose(qkv.reshape(B, S, num_heads, 3 * hd), (0, 2, 1, 3))
    q, k, v = jnp.split(qkv, 3, axis=-1)

    WQ_ = jnp.swapaxes(tile_pruning(q, bias_rand, 2, 2, milesone=True), -2, -1)
    WK_ = jnp.swapaxes(tile_pruning(k, bias_rand, 2, 2, milesone=True), -2, -1)
    WV_ = jnp.swapaxes(v, -2, -1)
    WO_ = row_pruning_with_zeros(wo_rand, 2)

    x_ = x.reshape(B, 1, S, Din)
    q_ = jnp.matmul(x_, WQ_)
    k_ = jnp.matmul(x_, WK_)
    precompute = jnp.matmul(jnp.swapaxes(WV_, -2, -1), jnp.swapaxes(WO_, -2, -1))
    d_k = q.shape[-1]
    scale_values = jnp.matmul(q_ / jnp.sqrt(jnp.float32(d_k)), jnp.swapaxes(k_, -2, -1))
    preoutput = jnp.matmul(precompute, x_)
    output = jnp.matmul(scale_values, preoutput)
    return output.reshape(x.shape)


if __name__ == "__main__":
    B, S = 2, 8
    input_dim = 32
    embed_dim = 32
    num_heads = 1                       # forced by the reference forward's shape math
    head_dim = embed_dim // num_heads

    key = jax.random.PRNGKey(0)
    k_x, k_qkv, k_o, k_wo, k_bias = jax.random.split(key, 5)

    x = jax.random.normal(k_x, (B, S, input_dim), jnp.float32)

    # qkv_proj: xavier_uniform weight, zero bias (stored as (in, out) for x @ W)
    bound = math.sqrt(6.0 / (input_dim + 3 * embed_dim))
    w_qkv = jax.random.uniform(k_qkv, (input_dim, 3 * embed_dim), jnp.float32,
                               minval=-bound, maxval=bound)
    b_qkv = jnp.zeros((3 * embed_dim,), jnp.float32)

    # o_proj params exist in __init__ but are never used by this forward
    bound_o = math.sqrt(6.0 / (2 * embed_dim))
    _w_o = jax.random.uniform(k_o, (embed_dim, embed_dim), jnp.float32,
                              minval=-bound_o, maxval=bound_o)
    _b_o = jnp.zeros((embed_dim,), jnp.float32)

    # torch.randn tensors created inside forward -> generated deterministically here
    wo_rand = jax.random.normal(k_wo, (B, num_heads, S, head_dim), jnp.float32)
    bias_rand = jax.random.normal(k_bias, (B, num_heads, S, head_dim), jnp.float32)

    params = (w_qkv, b_qkv, wo_rand, bias_rand)

    fwd = jax.jit(multihead_attention_secondary, static_argnums=(2,))
    out = jax.block_until_ready(fwd(x, params, num_heads))

    ref = reference_forward(x, params, num_heads)
    rel_err = float(jnp.max(jnp.abs(out - ref)) / (jnp.max(jnp.abs(ref)) + 1e-6))
    assert out.shape == x.shape, (out.shape, x.shape)
    assert rel_err < 5e-2, f"mismatch vs JAX reference: rel_err={rel_err}"
    print("KERNEL_OK")
</pallas_src>

<mosaic_0001>
module attributes {stable_mosaic.version = 11 : i64} {
  func.func @_fused_mha_secondary_kernel(%arg0: i32, %arg1: memref<16x32xf32, #tpu.memory_space<vmem>>, %arg2: memref<32x96xf32, #tpu.memory_space<vmem>>, %arg3: memref<1x96xf32, #tpu.memory_space<vmem>>, %arg4: memref<16x32xf32, #tpu.memory_space<vmem>>, %arg5: memref<16x16xf32, #tpu.memory_space<vmem>>, %arg6: memref<32x32xf32, #tpu.memory_space<vmem>>, %arg7: memref<16x16xf32, #tpu.memory_space<vmem>>, %arg8: memref<16x16xf32, #tpu.memory_space<vmem>>, %arg9: memref<16x32xf32, #tpu.memory_space<vmem>>) attributes {dimension_semantics = [#tpu.dimension_semantics<arbitrary>], iteration_bounds = array<i64: 1>, scalar_prefetch = 0 : i64, scratch_operands = 0 : i64, tpu.core_type = #tpu.core_type<tc>, window_params = [{transform_indices = @transform_0, window_bounds = array<i64: 16, 32>}, {pipeline_mode = #tpu.pipeline_mode<synchronous>, transform_indices = @transform_1, window_bounds = array<i64: 32, 96>}, {pipeline_mode = #tpu.pipeline_mode<synchronous>, transform_indices = @transform_2, window_bounds = array<i64: 1, 96>}, {transform_indices = @transform_3, window_bounds = array<i64: 16, 32>}, {pipeline_mode = #tpu.pipeline_mode<synchronous>, transform_indices = @transform_4, window_bounds = array<i64: 16, 16>}, {pipeline_mode = #tpu.pipeline_mode<synchronous>, transform_indices = @transform_5, window_bounds = array<i64: 32, 32>}, {pipeline_mode = #tpu.pipeline_mode<synchronous>, transform_indices = @transform_6, window_bounds = array<i64: 16, 16>}, {pipeline_mode = #tpu.pipeline_mode<synchronous>, transform_indices = @transform_7, window_bounds = array<i64: 16, 16>}, {transform_indices = @transform_8, window_bounds = array<i64: 16, 32>}]} {
    %c0 = arith.constant 0 : index
    %c0_0 = arith.constant 0 : index
    %0 = vector.load %arg1[%c0, %c0_0] : memref<16x32xf32, #tpu.memory_space<vmem>>, vector<16x32xf32>
    %c0_1 = arith.constant 0 : index
    %c0_2 = arith.constant 0 : index
    %1 = vector.load %arg2[%c0_1, %c0_2] : memref<32x96xf32, #tpu.memory_space<vmem>>, vector<32x96xf32>
    %cst = arith.constant dense<0.000000e+00> : vector<16x96xf32>
    %2 = tpu.matmul %0, %1, %cst {dimension_numbers = #tpu.dot_dimension_numbers<[1], [0], [0], [1], [0, 0, 1, 1], [], []>} : vector<16x32xf32>, vector<32x96xf32>, vector<16x96xf32> -> vector<16x96xf32>
    %c0_3 = arith.constant 0 : index
    %c0_4 = arith.constant 0 : index
    %3 = vector.load %arg3[%c0_3, %c0_4] : memref<1x96xf32, #tpu.memory_space<vmem>>, vector<1x96xf32>
    %4 = vector.broadcast %3 : vector<1x96xf32> to vector<16x96xf32>
    %5 = arith.addf %2, %4 : vector<16x96xf32>
    %6 = vector.extract_strided_slice %5 {offsets = [0, 0], sizes = [16, 32], strides = [1, 1]} : vector<16x96xf32> to vector<16x32xf32>
    %7 = vector.extract_strided_slice %5 {offsets = [0, 32], sizes = [16, 32], strides = [1, 1]} : vector<16x96xf32> to vector<16x32xf32>
    %8 = vector.extract_strided_slice %5 {offsets = [0, 64], sizes = [16, 32], strides = [1, 1]} : vector<16x96xf32> to vector<16x32xf32>
    %c0_5 = arith.constant 0 : index
    %c0_6 = arith.constant 0 : index
    %9 = vector.load %arg5[%c0_5, %c0_6] : memref<16x16xf32, #tpu.memory_space<vmem>>, vector<16x16xf32>
    %c0_7 = arith.constant 0 : index
    %c0_8 = arith.constant 0 : index
    %10 = vector.load %arg6[%c0_7, %c0_8] : memref<32x32xf32, #tpu.memory_space<vmem>>, vector<32x32xf32>
    %c0_9 = arith.constant 0 : index
    %c0_10 = arith.constant 0 : index
    %11 = vector.load %arg7[%c0_9, %c0_10] : memref<16x16xf32, #tpu.memory_space<vmem>>, vector<16x16xf32>
    %c0_11 = arith.constant 0 : index
    %c0_12 = arith.constant 0 : index
    %12 = vector.load %arg8[%c0_11, %c0_12] : memref<16x16xf32, #tpu.memory_space<vmem>>, vector<16x16xf32>
    %13 = math.absf %6 : vector<16x32xf32>
    %cst_13 = arith.constant dense<0.000000e+00> : vector<16x32xf32>
    %14 = tpu.matmul %9, %13, %cst_13 {dimension_numbers = #tpu.dot_dimension_numbers<[1], [0], [0], [1], [0, 0, 1, 1], [], []>} : vector<16x16xf32>, vector<16x32xf32>, vector<16x32xf32> -> vector<16x32xf32>
    %cst_14 = arith.constant dense<0.000000e+00> : vector<16x32xf32>
    %15 = tpu.matmul %14, %10, %cst_14 {dimension_numbers = #tpu.dot_dimension_numbers<[1], [0], [0], [1], [0, 0, 1, 1], [], []>} : vector<16x32xf32>, vector<32x32xf32>, vector<16x32xf32> -> vector<16x32xf32>
    %cst_15 = arith.constant dense<0.000000e+00> : vector<16x32xf32>
    %16 = tpu.matmul %11, %15, %cst_15 {dimension_numbers = #tpu.dot_dimension_numbers<[1], [0], [0], [1], [0, 0, 1, 1], [], []>} : vector<16x16xf32>, vector<16x32xf32>, vector<16x32xf32> -> vector<16x32xf32>
    %cst_16 = arith.constant dense<0.000000e+00> : vector<16xf32>
    %17 = vector.multi_reduction <add>, %16, %cst_16 [1] : vector<16x32xf32> to vector<16xf32>
    %18 = vector.shape_cast %17 : vector<16xf32> to vector<16x1xf32>
    %cst_17 = arith.constant 3.906250e-03 : f32
    %19 = vector.broadcast %cst_17 : f32 to vector<16x1xf32>
    %20 = arith.mulf %18, %19 : vector<16x1xf32>
    %21 = vector.broadcast %20 : vector<16x1xf32> to vector<16x32xf32>
    %22 = arith.cmpf oge, %15, %21 : vector<16x32xf32>
    %cst_18 = arith.constant 0.176776692 : f32
    %cst_19 = arith.constant 0.000000e+00 : f32
    %23 = vector.broadcast %cst_18 : f32 to vector<16x32xf32>
    %24 = vector.broadcast %cst_19 : f32 to vector<16x32xf32>
    %25 = arith.select %22, %23, %24 : vector<16x32xi1>, vector<16x32xf32>
    %26 = arith.mulf %6, %25 : vector<16x32xf32>
    %27 = math.absf %7 : vector<16x32xf32>
    %cst_20 = arith.constant dense<0.000000e+00> : vector<16x32xf32>
    %28 = tpu.matmul %9, %27, %cst_20 {dimension_numbers = #tpu.dot_dimension_numbers<[1], [0], [0], [1], [0, 0, 1, 1], [], []>} : vector<16x16xf32>, vector<16x32xf32>, vector<16x32xf32> -> vector<16x32xf32>
    %cst_21 = arith.constant dense<0.000000e+00> : vector<16x32xf32>
    %29 = tpu.matmul %28, %10, %cst_21 {dimension_numbers = #tpu.dot_dimension_numbers<[1], [0], [0], [1], [0, 0, 1, 1], [], []>} : vector<16x32xf32>, vector<32x32xf32>, vector<16x32xf32> -> vector<16x32xf32>
    %cst_22 = arith.constant dense<0.000000e+00> : vector<16x32xf32>
    %30 = tpu.matmul %11, %29, %cst_22 {dimension_numbers = #tpu.dot_dimension_numbers<[1], [0], [0], [1], [0, 0, 1, 1], [], []>} : vector<16x16xf32>, vector<16x32xf32>, vector<16x32xf32> -> vector<16x32xf32>
    %cst_23 = arith.constant dense<0.000000e+00> : vector<16xf32>
    %31 = vector.multi_reduction <add>, %30, %cst_23 [1] : vector<16x32xf32> to vector<16xf32>
    %32 = vector.shape_cast %31 : vector<16xf32> to vector<16x1xf32>
    %cst_24 = arith.constant 3.906250e-03 : f32
    %33 = vector.broadcast %cst_24 : f32 to vector<16x1xf32>
    %34 = arith.mulf %32, %33 : vector<16x1xf32>
    %35 = vector.broadcast %34 : vector<16x1xf32> to vector<16x32xf32>
    %36 = arith.cmpf oge, %29, %35 : vector<16x32xf32>
    %cst_25 = arith.constant 1.000000e+00 : f32
    %cst_26 = arith.constant 0.000000e+00 : f32
    %37 = vector.broadcast %cst_25 : f32 to vector<16x32xf32>
    %38 = vector.broadcast %cst_26 : f32 to vector<16x32xf32>
    %39 = arith.select %36, %37, %38 : vector<16x32xi1>, vector<16x32xf32>
    %40 = arith.mulf %7, %39 : vector<16x32xf32>
    %c0_27 = arith.constant 0 : index
    %c0_28 = arith.constant 0 : index
    %41 = vector.load %arg4[%c0_27, %c0_28] : memref<16x32xf32, #tpu.memory_space<vmem>>, vector<16x32xf32>
    %42 = arith.mulf %41, %41 : vector<16x32xf32>
    %cst_29 = arith.constant dense<0.000000e+00> : vector<16xf32>
    %43 = vector.multi_reduction <add>, %42, %cst_29 [1] : vector<16x32xf32> to vector<16xf32>
    %44 = vector.shape_cast %43 : vector<16xf32> to vector<16x1xf32>
    %cst_30 = arith.constant 1.000000e+00 : f32
    %45 = vector.broadcast %cst_30 : f32 to vector<16x32xf32>
    %cst_31 = arith.constant dense<0.000000e+00> : vector<16x16xf32>
    %46 = tpu.matmul %45, %42, %cst_31 {dimension_numbers = #tpu.dot_dimension_numbers<[1], [1], [0], [0], [0, 0, 1, 0], [], []>} : vector<16x32xf32>, vector<16x32xf32>, vector<16x16xf32> -> vector<16x16xf32>
    %47 = vector.broadcast %44 : vector<16x1xf32> to vector<16x16xf32>
    %48 = arith.cmpf ole, %46, %47 : vector<16x16xf32>
    %49 = arith.extui %48 : vector<16x16xi1> to vector<16x16xi32>
    %50 = arith.sitofp %49 : vector<16x16xi32> to vector<16x16xf32>
    %51 = arith.mulf %50, %12 : vector<16x16xf32>
    %cst_32 = arith.constant dense<0.000000e+00> : vector<16xf32>
    %52 = vector.multi_reduction <add>, %51, %cst_32 [1] : vector<16x16xf32> to vector<16xf32>
    %53 = vector.shape_cast %52 : vector<16xf32> to vector<16x1xf32>
    %cst_33 = arith.constant 1.000000e+00 : f32
    %54 = vector.broadcast %cst_33 : f32 to vector<16x1xf32>
    %55 = arith.addf %53, %54 : vector<16x1xf32>
    %cst_34 = arith.constant 5.000000e+00 : f32
    %56 = vector.broadcast %cst_34 : f32 to vector<16x1xf32>
    %57 = arith.cmpf oge, %55, %56 : vector<16x1xf32>
    %cst_35 = arith.constant 1.000000e+00 : f32
    %cst_36 = arith.constant 0.000000e+00 : f32
    %58 = vector.broadcast %cst_35 : f32 to vector<16x1xf32>
    %59 = vector.broadcast %cst_36 : f32 to vector<16x1xf32>
    %60 = arith.select %57, %58, %59 : vector<16x1xi1>, vector<16x1xf32>
    %61 = vector.broadcast %60 : vector<16x1xf32> to vector<16x32xf32>
    %62 = arith.mulf %41, %61 : vector<16x32xf32>
    %cst_37 = arith.constant dense<0.000000e+00> : vector<16x16xf32>
    %63 = tpu.matmul %0, %26, %cst_37 {dimension_numbers = #tpu.dot_dimension_numbers<[1], [1], [0], [0], [0, 0, 1, 0], [], []>} : vector<16x32xf32>, vector<16x32xf32>, vector<16x16xf32> -> vector<16x16xf32>
    %cst_38 = arith.constant dense<0.000000e+00> : vector<16x16xf32>
    %64 = tpu.matmul %0, %40, %cst_38 {dimension_numbers = #tpu.dot_dimension_numbers<[1], [1], [0], [0], [0, 0, 1, 0], [], []>} : vector<16x32xf32>, vector<16x32xf32>, vector<16x16xf32> -> vector<16x16xf32>
    %cst_39 = arith.constant dense<0.000000e+00> : vector<16x16xf32>
    %65 = tpu.matmul %8, %62, %cst_39 {dimension_numbers = #tpu.dot_dimension_numbers<[1], [1], [0], [0], [0, 0, 1, 0], [], []>} : vector<16x32xf32>, vector<16x32xf32>, vector<16x16xf32> -> vector<16x16xf32>
    %66 = arith.mulf %63, %11 : vector<16x16xf32>
    %67 = arith.mulf %64, %11 : vector<16x16xf32>
    %68 = arith.mulf %65, %11 : vector<16x16xf32>
    %cst_40 = arith.constant dense<0.000000e+00> : vector<16x16xf32>
    %69 = tpu.matmul %66, %67, %cst_40 {dimension_numbers = #tpu.dot_dimension_numbers<[1], [1], [0], [0], [0, 0, 1, 0], [], []>} : vector<16x16xf32>, vector<16x16xf32>, vector<16x16xf32> -> vector<16x16xf32>
    %cst_41 = arith.constant dense<0.000000e+00> : vector<16x32xf32>
    %70 = tpu.matmul %68, %0, %cst_41 {dimension_numbers = #tpu.dot_dimension_numbers<[1], [0], [0], [1], [0, 0, 1, 1], [], []>} : vector<16x16xf32>, vector<16x32xf32>, vector<16x32xf32> -> vector<16x32xf32>
    %cst_42 = arith.constant dense<0.000000e+00> : vector<16x32xf32>
    %71 = tpu.matmul %69, %70, %cst_42 {dimension_numbers = #tpu.dot_dimension_numbers<[1], [0], [0], [1], [0, 0, 1, 1], [], []>} : vector<16x16xf32>, vector<16x32xf32>, vector<16x32xf32> -> vector<16x32xf32>
    %c0_43 = arith.constant 0 : index
    %c0_44 = arith.constant 0 : index
    %72 = vector.load %arg9[%c0_43, %c0_44] : memref<16x32xf32, #tpu.memory_space<vmem>>, vector<16x32xf32>
    tpu.vector_store %arg9[%c0_43, %c0_44], %71 {strides = array<i32>} : memref<16x32xf32, #tpu.memory_space<vmem>>, vector<16x32xf32>,
    return
  }
  func.func @transform_0(%arg0: i32) -> (i32, i32) {
    %c0_i32 = arith.constant 0 : i32
    %c0_i32_0 = arith.constant 0 : i32
    return %arg0, %c0_i32 : i32, i32
  }
  func.func @transform_1(%arg0: i32) -> (i32, i32) {
    %c0_i32 = arith.constant 0 : i32
    %c0_i32_0 = arith.constant 0 : i32
    %c0_i32_1 = arith.constant 0 : i32
    return %c0_i32, %c0_i32_0 : i32, i32
  }
  func.func @transform_2(%arg0: i32) -> (i32, i32) {
    %c0_i32 = arith.constant 0 : i32
    %c0_i32_0 = arith.constant 0 : i32
    %c0_i32_1 = arith.constant 0 : i32
    return %c0_i32, %c0_i32_0 : i32, i32
  }
  func.func @transform_3(%arg0: i32) -> (i32, i32) {
    %c0_i32 = arith.constant 0 : i32
    %c0_i32_0 = arith.constant 0 : i32
    return %arg0, %c0_i32 : i32, i32
  }
  func.func @transform_4(%arg0: i32) -> (i32, i32) {
    %c0_i32 = arith.constant 0 : i32
    %c0_i32_0 = arith.constant 0 : i32
    %c0_i32_1 = arith.constant 0 : i32
    return %c0_i32, %c0_i32_0 : i32, i32
  }
  func.func @transform_5(%arg0: i32) -> (i32, i32) {
    %c0_i32 = arith.constant 0 : i32
    %c0_i32_0 = arith.constant 0 : i32
    %c0_i32_1 = arith.constant 0 : i32
    return %c0_i32, %c0_i32_0 : i32, i32
  }
  func.func @transform_6(%arg0: i32) -> (i32, i32) {
    %c0_i32 = arith.constant 0 : i32
    %c0_i32_0 = arith.constant 0 : i32
    %c0_i32_1 = arith.constant 0 : i32
    return %c0_i32, %c0_i32_0 : i32, i32
  }
  func.func @transform_7(%arg0: i32) -> (i32, i32) {
    %c0_i32 = arith.constant 0 : i32
    %c0_i32_0 = arith.constant 0 : i32
    %c0_i32_1 = arith.constant 0 : i32
    return %c0_i32, %c0_i32_0 : i32, i32
  }
  func.func @transform_8(%arg0: i32) -> (i32, i32) {
    %c0_i32 = arith.constant 0 : i32
    %c0_i32_0 = arith.constant 0 : i32
    return %arg0, %c0_i32 : i32, i32
  }
}

</mosaic_0001>

<llo_original>
// kernel: multihead_attention_secondary.1
$region0: #{multihead_attention_secondary.1}
  #allocation0 [shape = 'u32[]', space=smem, size = 0x4, offset = 0x4, fixed_abs, tag = 'smem constant byte address 0x4 - core index']
  #allocation1 [shape = 'u32[144,128]{1,0:T(1,128)}', space=vmem, size = 0x12000, scoped, tag = 'internal scratch']
  %s0 = inlined_call_operand.hbm [shape: f32[16,32], index: 0, kind: input, shape index: {}]
  %s1 = inlined_call_operand.hbm [shape: f32[32,96], index: 1, kind: input, shape index: {}]
  %s2 = inlined_call_operand.vmem [shape: f32[1,96], index: 2, kind: input, shape index: {}]
  %s3 = inlined_call_operand.vmem [shape: f32[16,32], index: 3, kind: input, shape index: {}]
  %s4 = inlined_call_operand.hbm [shape: f32[16,16], index: 4, kind: input, shape index: {}]
  %s5 = inlined_call_operand.hbm [shape: f32[32,32], index: 5, kind: input, shape index: {}]
  %s6 = inlined_call_operand.hbm [shape: f32[16,16], index: 6, kind: input, shape index: {}]
  %s7 = inlined_call_operand.vmem [shape: f32[16,16], index: 7, kind: input, shape index: {}]
  %s8 = inlined_call_operand.hbm [shape: f32[16,32], index: 8, kind: output, shape index: {}]
  %s9 = sld [smem:[#allocation0]]
  $region62: #{multihead_attention_secondary.1} parent=0
    _
  %s11 = ssub.s32 1, %s9
  %s12 = scalar_select 0, %s11, %s9
  $region1: #{multihead_attention_secondary.1} parent=0
    #allocation2 [shape = 'u8[8192]{0}', space=vmem, size = 0x2000, scoped, tag = 'input window, operand 0, single buffered']
    #allocation3 [shape = 's32[1]{0}', space=sflag, size = 0x4, scoped, tag = 'scoped memory for multihead_attention_secondary.1']
    #allocation4 [shape = 's32[1]{0}', space=sflag, size = 0x4, scoped, tag = 'scoped memory for multihead_attention_secondary.1']
    #allocation5 [shape = 'u8[16384]{0}', space=vmem, size = 0x4000, scoped, tag = 'input window, operand 1, single buffered']
    #allocation6 [shape = 's32[1]{0}', space=sflag, size = 0x4, scoped, tag = 'scoped memory for multihead_attention_secondary.1']
    #allocation7 [shape = 'u8[8192]{0}', space=vmem, size = 0x2000, scoped, tag = 'input window, operand 4, single buffered']
    #allocation8 [shape = 'u8[16384]{0}', space=vmem, size = 0x4000, scoped, tag = 'input window, operand 5, single buffered']
    #allocation9 [shape = 's32[1]{0}', space=sflag, size = 0x4, scoped, tag = 'scoped memory for multihead_attention_secondary.1']
    #allocation10 [shape = 'u8[8192]{0}', space=vmem, size = 0x2000, scoped, tag = 'input window, operand 6, single buffered']
    #allocation11 [shape = 'u8[8192]{0}', space=vmem, size = 0x2000, scoped, tag = 'output window, operand 0, single buffered']
    %13 = vsyncpa [#allocation3], 0
    %14 = vsyncpa [#allocation6], 0
    %15 = vsyncpa [#allocation9], 0
    %16 = vsyncpa [#allocation4], 0
    // Predicated region
    $region2: #{multihead_attention_secondary.1} parent=1 // pred_check
      _
    $region3: #{multihead_attention_secondary.1} parent=1 // pred_check_branch
      %18 = sbr.rel (0) target = $region5
    $region4: #{multihead_attention_secondary.1} parent=1 // pred_region
      %s20 = ssub.s32 256, 256
      %21 = vsyncadd [#allocation3], %s20
      %s22 = sshll.u32 [#allocation2], 4
      %s23 = int_to_ptr.vmem [resolvable:$true] %s22
      %28 = dma.hbm_to_vmem [thread:$0]  %s0, 256, %s23, [#allocation3], 128, 128, 8
    $region5: #{multihead_attention_secondary.1} parent=1 // pred_fallthru
      _
    // Predicated region
    $region6: #{multihead_attention_secondary.1} parent=1 // pred_check
      _
    $region7: #{multihead_attention_secondary.1} parent=1 // pred_check_branch
      %30 = sbr.rel (0) target = $region9
    $region8: #{multihead_attention_secondary.1} parent=1 // pred_region
      %s32 = ssub.s32 512, 512
      %33 = vsyncadd [#allocation6], %s32
      %s34 = sshll.u32 [#allocation5], 4
      %s35 = int_to_ptr.vmem [resolvable:$true] %s34
      %40 = dma.hbm_to_vmem [thread:$0]  %s1, 512, %s35, [#allocation6], 128, 128, 8
    $region9: #{multihead_attention_secondary.1} parent=1 // pred_fallthru
      _
    // Predicated region
    $region10: #{multihead_attention_secondary.1} parent=1 // pred_check
      _
    $region11: #{multihead_attention_secondary.1} parent=1 // pred_check_branch
      %42 = sbr.rel (0) target = $region13
    $region12: #{multihead_attention_secondary.1} parent=1 // pred_region
      _
    $region13: #{multihead_attention_secondary.1} parent=1 // pred_fallthru
      _
    // Predicated region
    $region14: #{multihead_attention_secondary.1} parent=1 // pred_check
      _
    $region15: #{multihead_attention_secondary.1} parent=1 // pred_check_branch
      %44 = sbr.rel (0) target = $region17
    $region16: #{multihead_attention_secondary.1} parent=1 // pred_region
      _
    $region17: #{multihead_attention_secondary.1} parent=1 // pred_fallthru
      _
    // Predicated region
    $region18: #{multihead_attention_secondary.1} parent=1 // pred_check
      _
    $region19: #{multihead_attention_secondary.1} parent=1 // pred_check_branch
      %46 = sbr.rel (0) target = $region21
    $region20: #{multihead_attention_secondary.1} parent=1 // pred_region
      %s48 = ssub.s32 256, 256
      %49 = vsyncadd [#allocation6], %s48
      %s50 = sshll.u32 [#allocation7], 4
      %s51 = int_to_ptr.vmem [resolvable:$true] %s50
      %56 = dma.hbm_to_vmem [thread:$0]  %s4, 256, %s51, [#allocation6], 128, 128, 8
    $region21: #{multihead_attention_secondary.1} parent=1 // pred_fallthru
      _
    // Predicated region
    $region22: #{multihead_attention_secondary.1} parent=1 // pred_check
      _
    $region23: #{multihead_attention_secondary.1} parent=1 // pred_check_branch
      %58 = sbr.rel (0) target = $region25
    $region24: #{multihead_attention_secondary.1} parent=1 // pred_region
      %s60 = ssub.s32 512, 512
      %61 = vsyncadd [#allocation9], %s60
      %s62 = sshll.u32 [#allocation8], 4
      %s63 = int_to_ptr.vmem [resolvable:$true] %s62
      %68 = dma.hbm_to_vmem [thread:$0]  %s5, 512, %s63, [#allocation9], 128, 128, 8
    $region25: #{multihead_attention_secondary.1} parent=1 // pred_fallthru
      _
    // Predicated region
    $region26: #{multihead_attention_secondary.1} parent=1 // pred_check
      _
    $region27: #{multihead_attention_secondary.1} parent=1 // pred_check_branch
      %70 = sbr.rel (0) target = $region29
    $region28: #{multihead_attention_secondary.1} parent=1 // pred_region
      %s72 = ssub.s32 256, 256
      %73 = vsyncadd [#allocation9], %s72
      %s74 = sshll.u32 [#allocation10], 4
      %s75 = int_to_ptr.vmem [resolvable:$true] %s74
      %80 = dma.hbm_to_vmem [thread:$0]  %s6, 256, %s75, [#allocation9], 128, 128, 8
    $region29: #{multihead_attention_secondary.1} parent=1 // pred_fallthru
      _
    // Predicated region
    $region30: #{multihead_attention_secondary.1} parent=1 // pred_check
      _
    $region31: #{multihead_attention_secondary.1} parent=1 // pred_check_branch
      %82 = sbr.rel (0) target = $region33
    $region32: #{multihead_attention_secondary.1} parent=1 // pred_region
      _
    $region33: #{multihead_attention_secondary.1} parent=1 // pred_fallthru
      _
    // Predicated region
    $region34: #{multihead_attention_secondary.1} parent=1 // pred_check
      _
    $region35: #{multihead_attention_secondary.1} parent=1 // pred_check_branch
      %84 = sbr.rel (0) target = $region37
    $region36: #{multihead_attention_secondary.1} parent=1 // pred_region
      %85 = dma.done [#allocation3], 256
    $region37: #{multihead_attention_secondary.1} parent=1 // pred_fallthru
      _
    // Predicated region
    $region38: #{multihead_attention_secondary.1} parent=1 // pred_check
      _
    $region39: #{multihead_attention_secondary.1} parent=1 // pred_check_branch
      %87 = sbr.rel (0) target = $region41
    $region40: #{multihead_attention_secondary.1} parent=1 // pred_region
      %88 = dma.done [#allocation6], 512
    $region41: #{multihead_attention_secondary.1} parent=1 // pred_fallthru
      _
    // Predicated region
    $region42: #{multihead_attention_secondary.1} parent=1 // pred_check
      _
    $region43: #{multihead_attention_secondary.1} parent=1 // pred_check_branch
      %90 = sbr.rel (0) target = $region45
    $region44: #{multihead_attention_secondary.1} parent=1 // pred_region
      %91 = dma.done [#allocation6], 256
    $region45: #{multihead_attention_secondary.1} parent=1 // pred_fallthru
      _
    // Predicated region
    $region46: #{multihead_attention_secondary.1} parent=1 // pred_check
      _
    $region47: #{multihead_attention_secondary.1} parent=1 // pred_check_branch
      %93 = sbr.rel (0) target = $region49
    $region48: #{multihead_attention_secondary.1} parent=1 // pred_region
      %94 = dma.done [#allocation9], 512
    $region49: #{multihead_attention_secondary.1} parent=1 // pred_fallthru
      _
    // Predicated region
    $region50: #{multihead_attention_secondary.1} parent=1 // pred_check
      _
    $region51: #{multihead_attention_secondary.1} parent=1 // pred_check_branch
      %96 = sbr.rel (0) target = $region53
    $region52: #{multihead_attention_secondary.1} parent=1 // pred_region
      %97 = dma.done [#allocation9], 256
    $region53: #{multihead_attention_secondary.1} parent=1 // pred_fallthru
      _
    %v98 = vld [vmem:[#allocation2] sm:$0xff]
    %v99 = vld [vmem:[#allocation2 + $0x8] sm:$0xff]
    %v100 = vld [vmem:[#allocation5] sm:$0xff]
    %v101 = vld [vmem:[#allocation5 + $0x8] sm:$0xff]
    %v102 = vld [vmem:[#allocation5 + $0x10] sm:$0xff]
    %v103 = vld [vmem:[#allocation5 + $0x18] sm:$0xff]
    %v104 = vld [vmem:[%s2] sm:$0x1]
    %v106 = vlaneseq
    %v107 = vshrl.u32 %v106, 7
    %v108 = vsub.s32 0, %v107
    %v109 = vrot.slane %v104, %v108
    %vm111 = vcmask 261120
    %v113 = vsel %vm111, %v98, 0
    %v116 = vsel %vm111, %v99, 0
    %118 = vmatprep.subr.mxu0 0.0
    %119 = vmatpush1.msra.mxu0 %v100
    %120 = vmatprep.subr.mxu0 0.0
    %121 = vmatpush1.msra.mxu0 %v101
    %122 = vmatprep.subr.mxu0 0.0
    %123 = vmatpush1.msra.mxu0 %v102
    %124 = vmatprep.subr.mxu0 0.0
    %125 = vmatpush1.msra.mxu0 %v103
    %126 = vmatprep.subr.mxu0 0.0
    %127 = vmatpush1.msra.mxu0 0.0
    %128 = vmatprep.subr.mxu0 0.0
    %129 = vmatpush1.msra.mxu0 0.0
    %130 = vmatprep.subr.mxu0 0.0
    %131 = vmatpush1.msra.mxu0 0.0
    %132 = vmatprep.subr.mxu0 0.0
    %133 = vmatpush1.msra.mxu0 0.0
    %134 = vmatprep.subr.mxu0 0.0
    %135 = vmatpush1.msra.mxu0 0.0
    %136 = vmatprep.subr.mxu0 0.0
    %137 = vmatpush1.msra.mxu0 0.0
    %138 = vmatprep.subr.mxu0 0.0
    %139 = vmatpush1.msra.mxu0 0.0
    %140 = vmatprep.subr.mxu0 0.0
    %141 = vmatpush1.msra.mxu0 0.0
    %142 = vmatprep.subr.mxu0 0.0
    %143 = vmatpush1.msra.mxu0 0.0
    %144 = vmatprep.subr.mxu0 0.0
    %145 = vmatpush1.msra.mxu0 0.0
    %146 = vmatprep.subr.mxu0 0.0
    %147 = vmatpush1.msra.mxu0 0.0
    %148 = vmatprep.subr.mxu0 0.0
    %149 = vmatpush1.msra.mxu0 0.0
    %150 = vmatprep.subr.mxu0 0.0
    %151 = vmatpush1.msra.mxu0 0.0
    %152 = vmatprep.subr.mxu0 0.0
    %153 = vmatpush1.msra.mxu0 0.0
    %154 = vmatprep.subr.mxu0 0.0
    %155 = vmatpush1.msra.mxu0 0.0
    %156 = vmatprep.subr.mxu0 0.0
    %157 = vmatpush1.msra.mxu0 0.0
    %158 = vmatprep.subr.mxu0 0.0
    %159 = vmatpush1.msra.mxu0 0.0
    %160 = vmatprep.subr.mxu0 0.0
    %161 = vmatpush1.msra.mxu0 0.0
    %162 = vmatprep.subr.mxu0 0.0
    %163 = vmatpush1.msra.mxu0 0.0
    %164 = vmatprep.subr.mxu0 0.0
    %165 = vmatpush1.msra.mxu0 0.0
    %166 = vmatprep.subr.mxu0 0.0
    %167 = vmatpush1.msra.mxu0 0.0
    %168 = vmatprep.subr.mxu0 0.0
    %169 = vmatpush1.msra.mxu0 0.0
    %170 = vmatprep.subr.mxu0 0.0
    %171 = vmatpush1.msra.mxu0 0.0
    %172 = vmatprep.subr.mxu0 0.0
    %173 = vmatpush1.msra.mxu0 0.0
    %174 = vmatprep.subr.mxu0 0.0
    %175 = vmatpush1.msra.mxu0 0.0
    %176 = vmatprep.subr.mxu0 0.0
    %177 = vmatpush1.msra.mxu0 0.0
    %178 = vmatprep.subr.mxu0 0.0
    %179 = vmatpush1.msra.mxu0 0.0
    %180 = vmatprep.subr.mxu0 0.0
    %181 = vmatpush1.msra.mxu0 0.0
    %182 = vmatprep.mubr.f32.mxu0 0.0
    %183 = vmatmul.mubr.f32.gmra.mrb[0].mxu0 %v113
    %v184 = vpop.f32.mrb[0].mxu0
    %v185 = vadd.f32 %v109, %v184
    %v186 = vpop.f32.mrb[0].mxu0
    %187 = vmatprep.mubr.f32.mxu0 0.0
    %188 = vmatmul.mubr.f32.gmra.mrb[0].mxu0 %v116
    %v189 = vpop.f32.mrb[0].mxu0
    %v190 = vadd.f32 %v109, %v189
    %v191 = vpop.f32.mrb[0].mxu0
    %192 = vdwg.mxu0
    %v193 = vld [vmem:[#allocation7] sm:$0xff]
    %v194 = vld [vmem:[#allocation7 + $0x8] sm:$0xff]
    %v195 = vld [vmem:[#allocation8] sm:$0xff]
    %v196 = vld [vmem:[#allocation8 + $0x8] sm:$0xff]
    %v197 = vld [vmem:[#allocation8 + $0x10] sm:$0xff]
    %v198 = vld [vmem:[#allocation8 + $0x18] sm:$0xff]
    %v199 = vld [vmem:[#allocation10] sm:$0xff]
    %v200 = vld [vmem:[#allocation10 + $0x8] sm:$0xff]
    %v201 = vld [vmem:[%s7] sm:$0xff]
    %v202 = vld [vmem:[%s7 + $0x8] sm:$0xff]
    %v203 = vand.u32 2147483647, %v185
    %v204 = vand.u32 2147483647, %v190
    %vm205 = vcmask 130048
    %v207 = vsel %vm205, %v193, 0
    %v210 = vsel %vm205, %v194, 0
    %212 = vmatprep.subr.mxu0 0.0
    %213 = vmatpush1.msra.mxu0 %v203
    %214 = vmatprep.subr.mxu0 0.0
    %215 = vmatpush1.msra.mxu0 %v204
    %216 = vmatprep.subr.mxu0 0.0
    %217 = vmatpush1.msra.mxu0 0.0
    %218 = vmatprep.subr.mxu0 0.0
    %219 = vmatpush1.msra.mxu0 0.0
    %220 = vmatprep.subr.mxu0 0.0
    %221 = vmatpush1.msra.mxu0 0.0
    %222 = vmatprep.subr.mxu0 0.0
    %223 = vmatpush1.msra.mxu0 0.0
    %224 = vmatprep.subr.mxu0 0.0
    %225 = vmatpush1.msra.mxu0 0.0
    %226 = vmatprep.subr.mxu0 0.0
    %227 = vmatpush1.msra.mxu0 0.0
    %228 = vmatprep.subr.mxu0 0.0
    %229 = vmatpush1.msra.mxu0 0.0
    %230 = vmatprep.subr.mxu0 0.0
    %231 = vmatpush1.msra.mxu0 0.0
    %232 = vmatprep.subr.mxu0 0.0
    %233 = vmatpush1.msra.mxu0 0.0
    %234 = vmatprep.subr.mxu0 0.0
    %235 = vmatpush1.msra.mxu0 0.0
    %236 = vmatprep.subr.mxu0 0.0
    %237 = vmatpush1.msra.mxu0 0.0
    %238 = vmatprep.subr.mxu0 0.0
    %239 = vmatpush1.msra.mxu0 0.0
    %240 = vmatprep.subr.mxu0 0.0
    %241 = vmatpush1.msra.mxu0 0.0
    %242 = vmatprep.subr.mxu0 0.0
    %243 = vmatpush1.msra.mxu0 0.0
    %244 = vmatprep.subr.mxu0 0.0
    %245 = vmatpush1.msra.mxu0 0.0
    %246 = vmatprep.subr.mxu0 0.0
    %247 = vmatpush1.msra.mxu0 0.0
    %248 = vmatprep.subr.mxu0 0.0
    %249 = vmatpush1.msra.mxu0 0.0
    %250 = vmatprep.subr.mxu0 0.0
    %251 = vmatpush1.msra.mxu0 0.0
    %252 = vmatprep.subr.mxu0 0.0
    %253 = vmatpush1.msra.mxu0 0.0
    %254 = vmatprep.subr.mxu0 0.0
    %255 = vmatpush1.msra.mxu0 0.0
    %256 = vmatprep.subr.mxu0 0.0
    %257 = vmatpush1.msra.mxu0 0.0
    %258 = vmatprep.subr.mxu0 0.0
    %259 = vmatpush1.msra.mxu0 0.0
    %260 = vmatprep.subr.mxu0 0.0
    %261 = vmatpush1.msra.mxu0 0.0
    %262 = vmatprep.subr.mxu0 0.0
    %263 = vmatpush1.msra.mxu0 0.0
    %264 = vmatprep.subr.mxu0 0.0
    %265 = vmatpush1.msra.mxu0 0.0
    %266 = vmatprep.subr.mxu0 0.0
    %267 = vmatpush1.msra.mxu0 0.0
    %268 = vmatprep.subr.mxu0 0.0
    %269 = vmatpush1.msra.mxu0 0.0
    %270 = vmatprep.subr.mxu0 0.0
    %271 = vmatpush1.msra.mxu0 0.0
    %272 = vmatprep.subr.mxu0 0.0
    %273 = vmatpush1.msra.mxu0 0.0
    %274 = vmatprep.subr.mxu0 0.0
    %275 = vmatpush1.msra.mxu0 0.0
    %276 = vmatprep.mubr.f32.mxu0 0.0
    %277 = vmatmul.mubr.f32.gmra.mrb[0].mxu0 %v207
    %v278 = vpop.f32.mrb[0].mxu0
    %v279 = vadd.f32 0.0, %v278
    %v280 = vpop.f32.mrb[0].mxu0
    %281 = vmatprep.mubr.f32.mxu0 0.0
    %282 = vmatmul.mubr.f32.gmra.mrb[0].mxu0 %v210
    %v283 = vpop.f32.mrb[0].mxu0
    %v284 = vadd.f32 0.0, %v283
    %v285 = vpop.f32.mrb[0].mxu0
    %286 = vdwg.mxu0
    %v288 = vsel %vm111, %v279, 0
    %v291 = vsel %vm111, %v284, 0
    %293 = vmatprep.subr.mxu0 0.0
    %294 = vmatpush1.msra.mxu0 %v195
    %295 = vmatprep.subr.mxu0 0.0
    %296 = vmatpush1.msra.mxu0 %v196
    %297 = vmatprep.subr.mxu0 0.0
    %298 = vmatpush1.msra.mxu0 %v197
    %299 = vmatprep.subr.mxu0 0.0
    %300 = vmatpush1.msra.mxu0 %v198
    %301 = vmatprep.subr.mxu0 0.0
    %302 = vmatpush1.msra.mxu0 0.0
    %303 = vmatprep.subr.mxu0 0.0
    %304 = vmatpush1.msra.mxu0 0.0
    %305 = vmatprep.subr.mxu0 0.0
    %306 = vmatpush1.msra.mxu0 0.0
    %307 = vmatprep.subr.mxu0 0.0
    %308 = vmatpush1.msra.mxu0 0.0
    %309 = vmatprep.subr.mxu0 0.0
    %310 = vmatpush1.msra.mxu0 0.0
    %311 = vmatprep.subr.mxu0 0.0
    %312 = vmatpush1.msra.mxu0 0.0
    %313 = vmatprep.subr.mxu0 0.0
    %314 = vmatpush1.msra.mxu0 0.0
    %315 = vmatprep.subr.mxu0 0.0
    %316 = vmatpush1.msra.mxu0 0.0
    %317 = vmatprep.subr.mxu0 0.0
    %318 = vmatpush1.msra.mxu0 0.0
    %319 = vmatprep.subr.mxu0 0.0
    %320 = vmatpush1.msra.mxu0 0.0
    %321 = vmatprep.subr.mxu0 0.0
    %322 = vmatpush1.msra.mxu0 0.0
    %323 = vmatprep.subr.mxu0 0.0
    %324 = vmatpush1.msra.mxu0 0.0
    %325 = vmatprep.subr.mxu0 0.0
    %326 = vmatpush1.msra.mxu0 0.0
    %327 = vmatprep.subr.mxu0 0.0
    %328 = vmatpush1.msra.mxu0 0.0
    %329 = vmatprep.subr.mxu0 0.0
    %330 = vmatpush1.msra.mxu0 0.0
    %331 = vmatprep.subr.mxu0 0.0
    %332 = vmatpush1.msra.mxu0 0.0
    %333 = vmatprep.subr.mxu0 0.0
    %334 = vmatpush1.msra.mxu0 0.0
    %335 = vmatprep.subr.mxu0 0.0
    %336 = vmatpush1.msra.mxu0 0.0
    %337 = vmatprep.subr.mxu0 0.0
    %338 = vmatpush1.msra.mxu0 0.0
    %339 = vmatprep.subr.mxu0 0.0
    %340 = vmatpush1.msra.mxu0 0.0
    %341 = vmatprep.subr.mxu0 0.0
    %342 = vmatpush1.msra.mxu0 0.0
    %343 = vmatprep.subr.mxu0 0.0
    %344 = vmatpush1.msra.mxu0 0.0
    %345 = vmatprep.subr.mxu0 0.0
    %346 = vmatpush1.msra.mxu0 0.0
    %347 = vmatprep.subr.mxu0 0.0
    %348 = vmatpush1.msra.mxu0 0.0
    %349 = vmatprep.subr.mxu0 0.0
    %350 = vmatpush1.msra.mxu0 0.0
    %351 = vmatprep.subr.mxu0 0.0
    %352 = vmatpush1.msra.mxu0 0.0
    %353 = vmatprep.subr.mxu0 0.0
    %354 = vmatpush1.msra.mxu0 0.0
    %355 = vmatprep.subr.mxu0 0.0
    %356 = vmatpush1.msra.mxu0 0.0
    %357 = vmatprep.mubr.f32.mxu0 0.0
    %358 = vmatmul.mubr.f32.gmra.mrb[0].mxu0 %v288
    %v359 = vpop.f32.mrb[0].mxu0
    %v360 = vadd.f32 0.0, %v359
    %v361 = vpop.f32.mrb[0].mxu0
    %362 = vmatprep.mubr.f32.mxu0 0.0
    %363 = vmatmul.mubr.f32.gmra.mrb[0].mxu0 %v291
    %v364 = vpop.f32.mrb[0].mxu0
    %v365 = vadd.f32 0.0, %v364
    %v366 = vpop.f32.mrb[0].mxu0
    %367 = vdwg.mxu0
    %v369 = vsel %vm205, %v199, 0
    %v372 = vsel %vm205, %v200, 0
    %374 = vmatprep.subr.mxu0 0.0
    %375 = vmatpush1.msra.mxu0 %v360
    %376 = vmatprep.subr.mxu0 0.0
    %377 = vmatpush1.msra.mxu0 %v365
    %378 = vmatprep.subr.mxu0 0.0
    %379 = vmatpush1.msra.mxu0 0.0
    %380 = vmatprep.subr.mxu0 0.0
    %381 = vmatpush1.msra.mxu0 0.0
    %382 = vmatprep.subr.mxu0 0.0
    %383 = vmatpush1.msra.mxu0 0.0
    %384 = vmatprep.subr.mxu0 0.0
    %385 = vmatpush1.msra.mxu0 0.0
    %386 = vmatprep.subr.mxu0 0.0
    %387 = vmatpush1.msra.mxu0 0.0
    %388 = vmatprep.subr.mxu0 0.0
    %389 = vmatpush1.msra.mxu0 0.0
    %390 = vmatprep.subr.mxu0 0.0
    %391 = vmatpush1.msra.mxu0 0.0
    %392 = vmatprep.subr.mxu0 0.0
    %393 = vmatpush1.msra.mxu0 0.0
    %394 = vmatprep.subr.mxu0 0.0
    %395 = vmatpush1.msra.mxu0 0.0
    %396 = vmatprep.subr.mxu0 0.0
    %397 = vmatpush1.msra.mxu0 0.0
    %398 = vmatprep.subr.mxu0 0.0
    %399 = vmatpush1.msra.mxu0 0.0
    %400 = vmatprep.subr.mxu0 0.0
    %401 = vmatpush1.msra.mxu0 0.0
    %402 = vmatprep.subr.mxu0 0.0
    %403 = vmatpush1.msra.mxu0 0.0
    %404 = vmatprep.subr.mxu0 0.0
    %405 = vmatpush1.msra.mxu0 0.0
    %406 = vmatprep.subr.mxu0 0.0
    %407 = vmatpush1.msra.mxu0 0.0
    %408 = vmatprep.subr.mxu0 0.0
    %409 = vmatpush1.msra.mxu0 0.0
    %410 = vmatprep.subr.mxu0 0.0
    %411 = vmatpush1.msra.mxu0 0.0
    %412 = vmatprep.subr.mxu0 0.0
    %413 = vmatpush1.msra.mxu0 0.0
    %414 = vmatprep.subr.mxu0 0.0
    %415 = vmatpush1.msra.mxu0 0.0
    %416 = vmatprep.subr.mxu0 0.0
    %417 = vmatpush1.msra.mxu0 0.0
    %418 = vmatprep.subr.mxu0 0.0
    %419 = vmatpush1.msra.mxu0 0.0
    %420 = vmatprep.subr.mxu0 0.0
    %421 = vmatpush1.msra.mxu0 0.0
    %422 = vmatprep.subr.mxu0 0.0
    %423 = vmatpush1.msra.mxu0 0.0
    %424 = vmatprep.subr.mxu0 0.0
    %425 = vmatpush1.msra.mxu0 0.0
    %426 = vmatprep.subr.mxu0 0.0
    %427 = vmatpush1.msra.mxu0 0.0
    %428 = vmatprep.subr.mxu0 0.0
    %429 = vmatpush1.msra.mxu0 0.0
    %430 = vmatprep.subr.mxu0 0.0
    %431 = vmatpush1.msra.mxu0 0.0
    %432 = vmatprep.subr.mxu0 0.0
    %433 = vmatpush1.msra.mxu0 0.0
    %434 = vmatprep.subr.mxu0 0.0
    %435 = vmatpush1.msra.mxu0 0.0
    %436 = vmatprep.subr.mxu0 0.0
    %437 = vmatpush1.msra.mxu0 0.0
    %438 = vmatprep.mubr.f32.mxu0 0.0
    %439 = vmatmul.mubr.f32.gmra.mrb[0].mxu0 %v369
    %v440 = vpop.f32.mrb[0].mxu0
    %v441 = vadd.f32 0.0, %v440
    %v442 = vpop.f32.mrb[0].mxu0
    %443 = vmatprep.mubr.f32.mxu0 0.0
    %444 = vmatmul.mubr.f32.gmra.mrb[0].mxu0 %v372
    %v445 = vpop.f32.mrb[0].mxu0
    %v446 = vadd.f32 0.0, %v445
    %v447 = vpop.f32.mrb[0].mxu0
    %448 = vdwg.mxu0
    %v449 = vsel %vm111, %v441, 0.0
    %450 = vadd.xlane.f32.xlu0 %v449
    %v451 = vpop.xlane.xlu0 %450
    %v452 = vsel %vm111, %v446, 0.0
    %453 = vadd.xlane.f32.xlu0 %v452
    %v454 = vpop.xlane.xlu0 %453
    %v455 = vmul.f32 %v451, 0.00390625
    %v456 = vmul.f32 %v454, 0.00390625
    %vm457 = vcmp.ge.f32.partialorder %v360, %v455
    %vm458 = vcmp.ge.f32.partialorder %v365, %v456
    %v459 = vsel %vm457, 0.17677669, 0.0
    %v460 = vsel %vm458, 0.17677669, 0.0
    %v461 = vmul.f32 %v185, %v459
    %v462 = vmul.f32 %v190, %v460
    %465 = vrot.lane.b32.xlu0 %v203, 96
    %v466 = vpop.permute.xlu0 %465
    %467 = vrot.lane.b32.xlu0 %v204, 96
    %v468 = vpop.permute.xlu0 %467
    %471 = vmatprep.subr.mxu0 0.0
    %472 = vmatpush1.msra.mxu0 %v466
    %473 = vmatprep.subr.mxu0 0.0
    %474 = vmatpush1.msra.mxu0 %v468
    %475 = vmatprep.subr.mxu0 0.0
    %476 = vmatpush1.msra.mxu0 0.0
    %477 = vmatprep.subr.mxu0 0.0
    %478 = vmatpush1.msra.mxu0 0.0
    %479 = vmatprep.subr.mxu0 0.0
    %480 = vmatpush1.msra.mxu0 0.0
    %481 = vmatprep.subr.mxu0 0.0
    %482 = vmatpush1.msra.mxu0 0.0
    %483 = vmatprep.subr.mxu0 0.0
    %484 = vmatpush1.msra.mxu0 0.0
    %485 = vmatprep.subr.mxu0 0.0
    %486 = vmatpush1.msra.mxu0 0.0
    %487 = vmatprep.subr.mxu0 0.0
    %488 = vmatpush1.msra.mxu0 0.0
    %489 = vmatprep.subr.mxu0 0.0
    %490 = vmatpush1.msra.mxu0 0.0
    %491 = vmatprep.subr.mxu0 0.0
    %492 = vmatpush1.msra.mxu0 0.0
    %493 = vmatprep.subr.mxu0 0.0
    %494 = vmatpush1.msra.mxu0 0.0
    %495 = vmatprep.subr.mxu0 0.0
    %496 = vmatpush1.msra.mxu0 0.0
    %497 = vmatprep.subr.mxu0 0.0
    %498 = vmatpush1.msra.mxu0 0.0
    %499 = vmatprep.subr.mxu0 0.0
    %500 = vmatpush1.msra.mxu0 0.0
    %501 = vmatprep.subr.mxu0 0.0
    %502 = vmatpush1.msra.mxu0 0.0
    %503 = vmatprep.subr.mxu0 0.0
    %504 = vmatpush1.msra.mxu0 0.0
    %505 = vmatprep.subr.mxu0 0.0
    %506 = vmatpush1.msra.mxu0 0.0
    %507 = vmatprep.subr.mxu0 0.0
    %508 = vmatpush1.msra.mxu0 0.0
    %509 = vmatprep.subr.mxu0 0.0
    %510 = vmatpush1.msra.mxu0 0.0
    %511 = vmatprep.subr.mxu0 0.0
    %512 = vmatpush1.msra.mxu0 0.0
    %513 = vmatprep.subr.mxu0 0.0
    %514 = vmatpush1.msra.mxu0 0.0
    %515 = vmatprep.subr.mxu0 0.0
    %516 = vmatpush1.msra.mxu0 0.0
    %517 = vmatprep.subr.mxu0 0.0
    %518 = vmatpush1.msra.mxu0 0.0
    %519 = vmatprep.subr.mxu0 0.0
    %520 = vmatpush1.msra.mxu0 0.0
    %521 = vmatprep.subr.mxu0 0.0
    %522 = vmatpush1.msra.mxu0 0.0
    %523 = vmatprep.subr.mxu0 0.0
    %524 = vmatpush1.msra.mxu0 0.0
    %525 = vmatprep.subr.mxu0 0.0
    %526 = vmatpush1.msra.mxu0 0.0
    %527 = vmatprep.subr.mxu0 0.0
    %528 = vmatpush1.msra.mxu0 0.0
    %529 = vmatprep.subr.mxu0 0.0
    %530 = vmatpush1.msra.mxu0 0.0
    %531 = vmatprep.subr.mxu0 0.0
    %532 = vmatpush1.msra.mxu0 0.0
    %533 = vmatprep.subr.mxu0 0.0
    %534 = vmatpush1.msra.mxu0 0.0
    %535 = vmatprep.mubr.f32.mxu0 0.0
    %536 = vmatmul.mubr.f32.gmra.mrb[0].mxu0 %v207
    %v537 = vpop.f32.mrb[0].mxu0
    %v538 = vadd.f32 0.0, %v537
    %v539 = vpop.f32.mrb[0].mxu0
    %540 = vmatprep.mubr.f32.mxu0 0.0
    %541 = vmatmul.mubr.f32.gmra.mrb[0].mxu0 %v210
    %v542 = vpop.f32.mrb[0].mxu0
    %v543 = vadd.f32 0.0, %v542
    %v544 = vpop.f32.mrb[0].mxu0
    %545 = vdwg.mxu0
    %v547 = vsel %vm111, %v538, 0
    %v550 = vsel %vm111, %v543, 0
    %552 = vmatprep.subr.mxu0 0.0
    %553 = vmatpush1.msra.mxu0 %v195
    %554 = vmatprep.subr.mxu0 0.0
    %555 = vmatpush1.msra.mxu0 %v196
    %556 = vmatprep.subr.mxu0 0.0
    %557 = vmatpush1.msra.mxu0 %v197
    %558 = vmatprep.subr.mxu0 0.0
    %559 = vmatpush1.msra.mxu0 %v198
    %560 = vmatprep.subr.mxu0 0.0
    %561 = vmatpush1.msra.mxu0 0.0
    %562 = vmatprep.subr.mxu0 0.0
    %563 = vmatpush1.msra.mxu0 0.0
    %564 = vmatprep.subr.mxu0 0.0
    %565 = vmatpush1.msra.mxu0 0.0
    %566 = vmatprep.subr.mxu0 0.0
    %567 = vmatpush1.msra.mxu0 0.0
    %568 = vmatprep.subr.mxu0 0.0
    %569 = vmatpush1.msra.mxu0 0.0
    %570 = vmatprep.subr.mxu0 0.0
    %571 = vmatpush1.msra.mxu0 0.0
    %572 = vmatprep.subr.mxu0 0.0
    %573 = vmatpush1.msra.mxu0 0.0
    %574 = vmatprep.subr.mxu0 0.0
    %575 = vmatpush1.msra.mxu0 0.0
    %576 = vmatprep.subr.mxu0 0.0
    %577 = vmatpush1.msra.mxu0 0.0
    %578 = vmatprep.subr.mxu0 0.0
    %579 = vmatpush1.msra.mxu0 0.0
    %580 = vmatprep.subr.mxu0 0.0
    %581 = vmatpush1.msra.mxu0 0.0
    %582 = vmatprep.subr.mxu0 0.0
    %583 = vmatpush1.msra.mxu0 0.0
    %584 = vmatprep.subr.mxu0 0.0
    %585 = vmatpush1.msra.mxu0 0.0
    %586 = vmatprep.subr.mxu0 0.0
    %587 = vmatpush1.msra.mxu0 0.0
    %588 = vmatprep.subr.mxu0 0.0
    %589 = vmatpush1.msra.mxu0 0.0
    %590 = vmatprep.subr.mxu0 0.0
    %591 = vmatpush1.msra.mxu0 0.0
    %592 = vmatprep.subr.mxu0 0.0
    %593 = vmatpush1.msra.mxu0 0.0
    %594 = vmatprep.subr.mxu0 0.0
    %595 = vmatpush1.msra.mxu0 0.0
    %596 = vmatprep.subr.mxu0 0.0
    %597 = vmatpush1.msra.mxu0 0.0
    %598 = vmatprep.subr.mxu0 0.0
    %599 = vmatpush1.msra.mxu0 0.0
    %600 = vmatprep.subr.mxu0 0.0
    %601 = vmatpush1.msra.mxu0 0.0
    %602 = vmatprep.subr.mxu0 0.0
    %603 = vmatpush1.msra.mxu0 0.0
    %604 = vmatprep.subr.mxu0 0.0
    %605 = vmatpush1.msra.mxu0 0.0
    %606 = vmatprep.subr.mxu0 0.0
    %607 = vmatpush1.msra.mxu0 0.0
    %608 = vmatprep.subr.mxu0 0.0
    %609 = vmatpush1.msra.mxu0 0.0
    %610 = vmatprep.subr.mxu0 0.0
    %611 = vmatpush1.msra.mxu0 0.0
    %612 = vmatprep.subr.mxu0 0.0
    %613 = vmatpush1.msra.mxu0 0.0
    %614 = vmatprep.subr.mxu0 0.0
    %615 = vmatpush1.msra.mxu0 0.0
    %616 = vmatprep.mubr.f32.mxu0 0.0
    %617 = vmatmul.mubr.f32.gmra.mrb[0].mxu0 %v547
    %v618 = vpop.f32.mrb[0].mxu0
    %v619 = vadd.f32 0.0, %v618
    %v620 = vpop.f32.mrb[0].mxu0
    %621 = vmatprep.mubr.f32.mxu0 0.0
    %622 = vmatmul.mubr.f32.gmra.mrb[0].mxu0 %v550
    %v623 = vpop.f32.mrb[0].mxu0
    %v624 = vadd.f32 0.0, %v623
    %v625 = vpop.f32.mrb[0].mxu0
    %626 = vdwg.mxu0
    %627 = vmatprep.subr.mxu0 0.0
    %628 = vmatpush1.msra.mxu0 %v619
    %629 = vmatprep.subr.mxu0 0.0
    %630 = vmatpush1.msra.mxu0 %v624
    %631 = vmatprep.subr.mxu0 0.0
    %632 = vmatpush1.msra.mxu0 0.0
    %633 = vmatprep.subr.mxu0 0.0
    %634 = vmatpush1.msra.mxu0 0.0
    %635 = vmatprep.subr.mxu0 0.0
    %636 = vmatpush1.msra.mxu0 0.0
    %637 = vmatprep.subr.mxu0 0.0
    %638 = vmatpush1.msra.mxu0 0.0
    %639 = vmatprep.subr.mxu0 0.0
    %640 = vmatpush1.msra.mxu0 0.0
    %641 = vmatprep.subr.mxu0 0.0
    %642 = vmatpush1.msra.mxu0 0.0
    %643 = vmatprep.subr.mxu0 0.0
    %644 = vmatpush1.msra.mxu0 0.0
    %645 = vmatprep.subr.mxu0 0.0
    %646 = vmatpush1.msra.mxu0 0.0
    %647 = vmatprep.subr.mxu0 0.0
    %648 = vmatpush1.msra.mxu0 0.0
    %649 = vmatprep.subr.mxu0 0.0
    %650 = vmatpush1.msra.mxu0 0.0
    %651 = vmatprep.subr.mxu0 0.0
    %652 = vmatpush1.msra.mxu0 0.0
    %653 = vmatprep.subr.mxu0 0.0
    %654 = vmatpush1.msra.mxu0 0.0
    %655 = vmatprep.subr.mxu0 0.0
    %656 = vmatpush1.msra.mxu0 0.0
    %657 = vmatprep.subr.mxu0 0.0
    %658 = vmatpush1.msra.mxu0 0.0
    %659 = vmatprep.subr.mxu0 0.0
    %660 = vmatpush1.msra.mxu0 0.0
    %661 = vmatprep.subr.mxu0 0.0
    %662 = vmatpush1.msra.mxu0 0.0
    %663 = vmatprep.subr.mxu0 0.0
    %664 = vmatpush1.msra.mxu0 0.0
    %665 = vmatprep.subr.mxu0 0.0
    %666 = vmatpush1.msra.mxu0 0.0
    %667 = vmatprep.subr.mxu0 0.0
    %668 = vmatpush1.msra.mxu0 0.0
    %669 = vmatprep.subr.mxu0 0.0
    %670 = vmatpush1.msra.mxu0 0.0
    %671 = vmatprep.subr.mxu0 0.0
    %672 = vmatpush1.msra.mxu0 0.0
    %673 = vmatprep.subr.mxu0 0.0
    %674 = vmatpush1.msra.mxu0 0.0
    %675 = vmatprep.subr.mxu0 0.0
    %676 = vmatpush1.msra.mxu0 0.0
    %677 = vmatprep.subr.mxu0 0.0
    %678 = vmatpush1.msra.mxu0 0.0
    %679 = vmatprep.subr.mxu0 0.0
    %680 = vmatpush1.msra.mxu0 0.0
    %681 = vmatprep.subr.mxu0 0.0
    %682 = vmatpush1.msra.mxu0 0.0
    %683 = vmatprep.subr.mxu0 0.0
    %684 = vmatpush1.msra.mxu0 0.0
    %685 = vmatprep.subr.mxu0 0.0
    %686 = vmatpush1.msra.mxu0 0.0
    %687 = vmatprep.subr.mxu0 0.0
    %688 = vmatpush1.msra.mxu0 0.0
    %689 = vmatprep.subr.mxu0 0.0
    %690 = vmatpush1.msra.mxu0 0.0
    %691 = vmatprep.mubr.f32.mxu0 0.0
    %692 = vmatmul.mubr.f32.gmra.mrb[0].mxu0 %v369
    %v693 = vpop.f32.mrb[0].mxu0
    %v694 = vadd.f32 0.0, %v693
    %v695 = vpop.f32.mrb[0].mxu0
    %696 = vmatprep.mubr.f32.mxu0 0.0
    %697 = vmatmul.mubr.f32.gmra.mrb[0].mxu0 %v372
    %v698 = vpop.f32.mrb[0].mxu0
    %v699 = vadd.f32 0.0, %v698
    %v700 = vpop.f32.mrb[0].mxu0
    %701 = vdwg.mxu0
    %v702 = vsel %vm111, %v694, 0.0
    %703 = vadd.xlane.f32.xlu0 %v702
    %v704 = vpop.xlane.xlu0 %703
    %v705 = vsel %vm111, %v699, 0.0
    %706 = vadd.xlane.f32.xlu0 %v705
    %v707 = vpop.xlane.xlu0 %706
    %v708 = vmul.f32 %v704, 0.00390625
    %v709 = vmul.f32 %v707, 0.00390625
    %vm710 = vcmp.ge.f32.partialorder %v619, %v708
    %vm711 = vcmp.ge.f32.partialorder %v624, %v709
    %v712 = vsel %vm710, 1.0, 0.0
    %v713 = vsel %vm711, 1.0, 0.0
    %716 = vrot.lane.b32.xlu0 %v712, 32
    %v717 = vpop.permute.xlu0 %716
    %718 = vrot.lane.b32.xlu0 %v713, 32
    %v719 = vpop.permute.xlu0 %718
    %v722 = vmul.f32 %v185, %v717
    %v723 = vmul.f32 %v190, %v719
    %v724 = vld [vmem:[%s3] sm:$0xff]
    %v725 = vld [vmem:[%s3 + $0x8] sm:$0xff]
    %v726 = vmul.f32 %v724, %v724
    %v727 = vmul.f32 %v725, %v725
    %v728 = vsel %vm111, %v726, 0.0
    %729 = vadd.xlane.f32.xlu0 %v728
    %v730 = vpop.xlane.xlu0 %729
    %v731 = vsel %vm111, %v727, 0.0
    %732 = vadd.xlane.f32.xlu0 %v731
    %v733 = vpop.xlane.xlu0 %732
    %v735 = vsel %vm111, 1.0, 0
    %v738 = vsel %vm111, %v726, 0
    %v741 = vsel %vm111, %v727, 0
    %743 = vmatprep.subr.mxu0 0.0
    %744 = vmatpush1.xpose.msra.mxu0 %v738
    %745 = vmatprep.subr.mxu0 0.0
    %746 = vmatpush1.xpose.msra.mxu0 %v741
    %747 = vmatprep.subr.mxu0 0.0
    %748 = vmatpush1.xpose.msra.mxu0 0.0
    %749 = vmatprep.subr.mxu0 0.0
    %750 = vmatpush1.xpose.msra.mxu0 0.0
    %751 = vmatprep.subr.mxu0 0.0
    %752 = vmatpush1.xpose.msra.mxu0 0.0
    %753 = vmatprep.subr.mxu0 0.0
    %754 = vmatpush1.xpose.msra.mxu0 0.0
    %755 = vmatprep.subr.mxu0 0.0
    %756 = vmatpush1.xpose.msra.mxu0 0.0
    %757 = vmatprep.subr.mxu0 0.0
    %758 = vmatpush1.xpose.msra.mxu0 0.0
    %759 = vmatprep.subr.mxu0 0.0
    %760 = vmatpush1.xpose.msra.mxu0 0.0
    %761 = vmatprep.subr.mxu0 0.0
    %762 = vmatpush1.xpose.msra.mxu0 0.0
    %763 = vmatprep.subr.mxu0 0.0
    %764 = vmatpush1.xpose.msra.mxu0 0.0
    %765 = vmatprep.subr.mxu0 0.0
    %766 = vmatpush1.xpose.msra.mxu0 0.0
    %767 = vmatprep.subr.mxu0 0.0
    %768 = vmatpush1.xpose.msra.mxu0 0.0
    %769 = vmatprep.subr.mxu0 0.0
    %770 = vmatpush1.xpose.msra.mxu0 0.0
    %771 = vmatprep.subr.mxu0 0.0
    %772 = vmatpush1.xpose.msra.mxu0 0.0
    %773 = vmatprep.subr.mxu0 0.0
    %774 = vmatpush1.xpose.msra.mxu0 0.0
    %775 = vmatprep.subr.mxu0 0.0
    %776 = vmatpush1.xpose.msra.mxu0 0.0
    %777 = vmatprep.subr.mxu0 0.0
    %778 = vmatpush1.xpose.msra.mxu0 0.0
    %779 = vmatprep.subr.mxu0 0.0
    %780 = vmatpush1.xpose.msra.mxu0 0.0
    %781 = vmatprep.subr.mxu0 0.0
    %782 = vmatpush1.xpose.msra.mxu0 0.0
    %783 = vmatprep.subr.mxu0 0.0
    %784 = vmatpush1.xpose.msra.mxu0 0.0
    %785 = vmatprep.subr.mxu0 0.0
    %786 = vmatpush1.xpose.msra.mxu0 0.0
    %787 = vmatprep.subr.mxu0 0.0
    %788 = vmatpush1.xpose.msra.mxu0 0.0
    %789 = vmatprep.subr.mxu0 0.0
    %790 = vmatpush1.xpose.msra.mxu0 0.0
    %791 = vmatprep.subr.mxu0 0.0
    %792 = vmatpush1.xpose.msra.mxu0 0.0
    %793 = vmatprep.subr.mxu0 0.0
    %794 = vmatpush1.xpose.msra.mxu0 0.0
    %795 = vmatprep.subr.mxu0 0.0
    %796 = vmatpush1.xpose.msra.mxu0 0.0
    %797 = vmatprep.subr.mxu0 0.0
    %798 = vmatpush1.xpose.msra.mxu0 0.0
    %799 = vmatprep.subr.mxu0 0.0
    %800 = vmatpush1.xpose.msra.mxu0 0.0
    %801 = vmatprep.subr.mxu0 0.0
    %802 = vmatpush1.xpose.msra.mxu0 0.0
    %803 = vmatprep.subr.mxu0 0.0
    %804 = vmatpush1.xpose.msra.mxu0 0.0
    %805 = vmatprep.subr.mxu0 0.0
    %806 = vmatpush1.xpose.msra.mxu0 0.0
    %807 = vmatprep.mubr.f32.mxu0 0.0
    %808 = vmatmul.mubr.f32.gmra.mrb[0].mxu0 %v735
    %v809 = vpop.f32.mrb[0].mxu0
    %v810 = vadd.f32 0.0, %v809
    %v811 = vpop.f32.mrb[0].mxu0
    %812 = vmatprep.mubr.f32.mxu0 0.0
    %813 = vmatmul.mubr.f32.gmra.mrb[0].mxu0 %v735
    %v814 = vpop.f32.mrb[0].mxu0
    %v815 = vadd.f32 0.0, %v814
    %v816 = vpop.f32.mrb[0].mxu0
    %817 = vdwg.mxu0
    %vm818 = vcmp.le.f32.partialorder %v810, %v730
    %vm819 = vcmp.le.f32.partialorder %v815, %v733
    %v820 = vsel %vm818, 1, 0
    %v821 = vsel %vm819, 1, 0
    %v822 = vcvt.s32.f32 %v820
    %v823 = vcvt.s32.f32 %v821
    %v824 = vmul.f32 %v822, %v201
    %v825 = vmul.f32 %v823, %v202
    %v826 = vsel %vm205, %v824, 0.0
    %827 = vadd.xlane.f32.xlu0 %v826
    %v828 = vpop.xlane.xlu0 %827
    %v829 = vsel %vm205, %v825, 0.0
    %830 = vadd.xlane.f32.xlu0 %v829
    %v831 = vpop.xlane.xlu0 %830
    %v832 = vadd.f32 %v828, 1.0
    %v833 = vadd.f32 %v831, 1.0
    %vm834 = vcmp.ge.f32.partialorder %v832, 5.0
    %vm835 = vcmp.ge.f32.partialorder %v833, 5.0
    %v836 = vsel %vm834, 1.0, 0.0
    %v837 = vsel %vm835, 1.0, 0.0
    %v838 = vmul.f32 %v724, %v836
    %v839 = vmul.f32 %v725, %v837
    %v841 = vsel %vm111, %v461, 0
    %v844 = vsel %vm111, %v462, 0
    %846 = vmatprep.subr.mxu0 0.0
    %847 = vmatpush1.xpose.msra.mxu0 %v841
    %848 = vmatprep.subr.mxu0 0.0
    %849 = vmatpush1.xpose.msra.mxu0 %v844
    %850 = vmatprep.subr.mxu0 0.0
    %851 = vmatpush1.xpose.msra.mxu0 0.0
    %852 = vmatprep.subr.mxu0 0.0
    %853 = vmatpush1.xpose.msra.mxu0 0.0
    %854 = vmatprep.subr.mxu0 0.0
    %855 = vmatpush1.xpose.msra.mxu0 0.0
    %856 = vmatprep.subr.mxu0 0.0
    %857 = vmatpush1.xpose.msra.mxu0 0.0
    %858 = vmatprep.subr.mxu0 0.0
    %859 = vmatpush1.xpose.msra.mxu0 0.0
    %860 = vmatprep.subr.mxu0 0.0
    %861 = vmatpush1.xpose.msra.mxu0 0.0
    %862 = vmatprep.subr.mxu0 0.0
    %863 = vmatpush1.xpose.msra.mxu0 0.0
    %864 = vmatprep.subr.mxu0 0.0
    %865 = vmatpush1.xpose.msra.mxu0 0.0
    %866 = vmatprep.subr.mxu0 0.0
    %867 = vmatpush1.xpose.msra.mxu0 0.0
    %868 = vmatprep.subr.mxu0 0.0
    %869 = vmatpush1.xpose.msra.mxu0 0.0
    %870 = vmatprep.subr.mxu0 0.0
    %871 = vmatpush1.xpose.msra.mxu0 0.0
    %872 = vmatprep.subr.mxu0 0.0
    %873 = vmatpush1.xpose.msra.mxu0 0.0
    %874 = vmatprep.subr.mxu0 0.0
    %875 = vmatpush1.xpose.msra.mxu0 0.0
    %876 = vmatprep.subr.mxu0 0.0
    %877 = vmatpush1.xpose.msra.mxu0 0.0
    %878 = vmatprep.subr.mxu0 0.0
    %879 = vmatpush1.xpose.msra.mxu0 0.0
    %880 = vmatprep.subr.mxu0 0.0
    %881 = vmatpush1.xpose.msra.mxu0 0.0
    %882 = vmatprep.subr.mxu0 0.0
    %883 = vmatpush1.xpose.msra.mxu0 0.0
    %884 = vmatprep.subr.mxu0 0.0
    %885 = vmatpush1.xpose.msra.mxu0 0.0
    %886 = vmatprep.subr.mxu0 0.0
    %887 = vmatpush1.xpose.msra.mxu0 0.0
    %888 = vmatprep.subr.mxu0 0.0
    %889 = vmatpush1.xpose.msra.mxu0 0.0
    %890 = vmatprep.subr.mxu0 0.0
    %891 = vmatpush1.xpose.msra.mxu0 0.0
    %892 = vmatprep.subr.mxu0 0.0
    %893 = vmatpush1.xpose.msra.mxu0 0.0
    %894 = vmatprep.subr.mxu0 0.0
    %895 = vmatpush1.xpose.msra.mxu0 0.0
    %896 = vmatprep.subr.mxu0 0.0
    %897 = vmatpush1.xpose.msra.mxu0 0.0
    %898 = vmatprep.subr.mxu0 0.0
    %899 = vmatpush1.xpose.msra.mxu0 0.0
    %900 = vmatprep.subr.mxu0 0.0
    %901 = vmatpush1.xpose.msra.mxu0 0.0
    %902 = vmatprep.subr.mxu0 0.0
    %903 = vmatpush1.xpose.msra.mxu0 0.0
    %904 = vmatprep.subr.mxu0 0.0
    %905 = vmatpush1.xpose.msra.mxu0 0.0
    %906 = vmatprep.subr.mxu0 0.0
    %907 = vmatpush1.xpose.msra.mxu0 0.0
    %908 = vmatprep.subr.mxu0 0.0
    %909 = vmatpush1.xpose.msra.mxu0 0.0
    %910 = vmatprep.mubr.f32.mxu0 0.0
    %911 = vmatmul.mubr.f32.gmra.mrb[0].mxu0 %v113
    %v912 = vpop.f32.mrb[0].mxu0
    %v913 = vadd.f32 0.0, %v912
    %v914 = vpop.f32.mrb[0].mxu0
    %915 = vmatprep.mubr.f32.mxu0 0.0
    %916 = vmatmul.mubr.f32.gmra.mrb[0].mxu0 %v116
    %v917 = vpop.f32.mrb[0].mxu0
    %v918 = vadd.f32 0.0, %v917
    %v919 = vpop.f32.mrb[0].mxu0
    %920 = vdwg.mxu0
    %923 = vrot.lane.b32.xlu0 %v722, 96
    %v924 = vpop.permute.xlu0 %923
    %925 = vrot.lane.b32.xlu0 %v723, 96
    %v926 = vpop.permute.xlu0 %925
    %v927 = vsel %vm111, %v924, 0
    %v929 = vsel %vm111, %v926, 0
    %931 = vmatprep.subr.mxu0 0.0
    %932 = vmatpush1.xpose.msra.mxu0 %v927
    %933 = vmatprep.subr.mxu0 0.0
    %934 = vmatpush1.xpose.msra.mxu0 %v929
    %935 = vmatprep.subr.mxu0 0.0
    %936 = vmatpush1.xpose.msra.mxu0 0.0
    %937 = vmatprep.subr.mxu0 0.0
    %938 = vmatpush1.xpose.msra.mxu0 0.0
    %939 = vmatprep.subr.mxu0 0.0
    %940 = vmatpush1.xpose.msra.mxu0 0.0
    %941 = vmatprep.subr.mxu0 0.0
    %942 = vmatpush1.xpose.msra.mxu0 0.0
    %943 = vmatprep.subr.mxu0 0.0
    %944 = vmatpush1.xpose.msra.mxu0 0.0
    %945 = vmatprep.subr.mxu0 0.0
    %946 = vmatpush1.xpose.msra.mxu0 0.0
    %947 = vmatprep.subr.mxu0 0.0
    %948 = vmatpush1.xpose.msra.mxu0 0.0
    %949 = vmatprep.subr.mxu0 0.0
    %950 = vmatpush1.xpose.msra.mxu0 0.0
    %951 = vmatprep.subr.mxu0 0.0
    %952 = vmatpush1.xpose.msra.mxu0 0.0
    %953 = vmatprep.subr.mxu0 0.0
    %954 = vmatpush1.xpose.msra.mxu0 0.0
    %955 = vmatprep.subr.mxu0 0.0
    %956 = vmatpush1.xpose.msra.mxu0 0.0
    %957 = vmatprep.subr.mxu0 0.0
    %958 = vmatpush1.xpose.msra.mxu0 0.0
    %959 = vmatprep.subr.mxu0 0.0
    %960 = vmatpush1.xpose.msra.mxu0 0.0
    %961 = vmatprep.subr.mxu0 0.0
    %962 = vmatpush1.xpose.msra.mxu0 0.0
    %963 = vmatprep.subr.mxu0 0.0
    %964 = vmatpush1.xpose.msra.mxu0 0.0
    %965 = vmatprep.subr.mxu0 0.0
    %966 = vmatpush1.xpose.msra.mxu0 0.0
    %967 = vmatprep.subr.mxu0 0.0
    %968 = vmatpush1.xpose.msra.mxu0 0.0
    %969 = vmatprep.subr.mxu0 0.0
    %970 = vmatpush1.xpose.msra.mxu0 0.0
    %971 = vmatprep.subr.mxu0 0.0
    %972 = vmatpush1.xpose.msra.mxu0 0.0
    %973 = vmatprep.subr.mxu0 0.0
    %974 = vmatpush1.xpose.msra.mxu0 0.0
    %975 = vmatprep.subr.mxu0 0.0
    %976 = vmatpush1.xpose.msra.mxu0 0.0
    %977 = vmatprep.subr.mxu0 0.0
    %978 = vmatpush1.xpose.msra.mxu0 0.0
    %979 = vmatprep.subr.mxu0 0.0
    %980 = vmatpush1.xpose.msra.mxu0 0.0
    %981 = vmatprep.subr.mxu0 0.0
    %982 = vmatpush1.xpose.msra.mxu0 0.0
    %983 = vmatprep.subr.mxu0 0.0
    %984 = vmatpush1.xpose.msra.mxu0 0.0
    %985 = vmatprep.subr.mxu0 0.0
    %986 = vmatpush1.xpose.msra.mxu0 0.0
    %987 = vmatprep.subr.mxu0 0.0
    %988 = vmatpush1.xpose.msra.mxu0 0.0
    %989 = vmatprep.subr.mxu0 0.0
    %990 = vmatpush1.xpose.msra.mxu0 0.0
    %991 = vmatprep.subr.mxu0 0.0
    %992 = vmatpush1.xpose.msra.mxu0 0.0
    %993 = vmatprep.subr.mxu0 0.0
    %994 = vmatpush1.xpose.msra.mxu0 0.0
    %995 = vmatprep.mubr.f32.mxu0 0.0
    %996 = vmatmul.mubr.f32.gmra.mrb[0].mxu0 %v113
    %v997 = vpop.f32.mrb[0].mxu0
    %v998 = vadd.f32 0.0, %v997
    %v999 = vpop.f32.mrb[0].mxu0
    %1000 = vmatprep.mubr.f32.mxu0 0.0
    %1001 = vmatmul.mubr.f32.gmra.mrb[0].mxu0 %v116
    %v1002 = vpop.f32.mrb[0].mxu0
    %v1003 = vadd.f32 0.0, %v1002
    %v1004 = vpop.f32.mrb[0].mxu0
    %1005 = vdwg.mxu0
    %1008 = vrot.lane.b32.xlu0 %v185, 64
    %v1009 = vpop.permute.xlu0 %1008
    %1010 = vrot.lane.b32.xlu0 %v190, 64
    %v1011 = vpop.permute.xlu0 %1010
    %v1012 = vsel %vm111, %v1009, 0
    %v1014 = vsel %vm111, %v1011, 0
    %v1017 = vsel %vm111, %v838, 0
    %v1020 = vsel %vm111, %v839, 0
    %1022 = vmatprep.subr.mxu0 0.0
    %1023 = vmatpush1.xpose.msra.mxu0 %v1017
    %1024 = vmatprep.subr.mxu0 0.0
    %1025 = vmatpush1.xpose.msra.mxu0 %v1020
    %1026 = vmatprep.subr.mxu0 0.0
    %1027 = vmatpush1.xpose.msra.mxu0 0.0
    %1028 = vmatprep.subr.mxu0 0.0
    %1029 = vmatpush1.xpose.msra.mxu0 0.0
    %1030 = vmatprep.subr.mxu0 0.0
    %1031 = vmatpush1.xpose.msra.mxu0 0.0
    %1032 = vmatprep.subr.mxu0 0.0
    %1033 = vmatpush1.xpose.msra.mxu0 0.0
    %1034 = vmatprep.subr.mxu0 0.0
    %1035 = vmatpush1.xpose.msra.mxu0 0.0
    %1036 = vmatprep.subr.mxu0 0.0
    %1037 = vmatpush1.xpose.msra.mxu0 0.0
    %1038 = vmatprep.subr.mxu0 0.0
    %1039 = vmatpush1.xpose.msra.mxu0 0.0
    %1040 = vmatprep.subr.mxu0 0.0
    %1041 = vmatpush1.xpose.msra.mxu0 0.0
    %1042 = vmatprep.subr.mxu0 0.0
    %1043 = vmatpush1.xpose.msra.mxu0 0.0
    %1044 = vmatprep.subr.mxu0 0.0
    %1045 = vmatpush1.xpose.msra.mxu0 0.0
    %1046 = vmatprep.subr.mxu0 0.0
    %1047 = vmatpush1.xpose.msra.mxu0 0.0
    %1048 = vmatprep.subr.mxu0 0.0
    %1049 = vmatpush1.xpose.msra.mxu0 0.0
    %1050 = vmatprep.subr.mxu0 0.0
    %1051 = vmatpush1.xpose.msra.mxu0 0.0
    %1052 = vmatprep.subr.mxu0 0.0
    %1053 = vmatpush1.xpose.msra.mxu0 0.0
    %1054 = vmatprep.subr.mxu0 0.0
    %1055 = vmatpush1.xpose.msra.mxu0 0.0
    %1056 = vmatprep.subr.mxu0 0.0
    %1057 = vmatpush1.xpose.msra.mxu0 0.0
    %1058 = vmatprep.subr.mxu0 0.0
    %1059 = vmatpush1.xpose.msra.mxu0 0.0
    %1060 = vmatprep.subr.mxu0 0.0
    %1061 = vmatpush1.xpose.msra.mxu0 0.0
    %1062 = vmatprep.subr.mxu0 0.0
    %1063 = vmatpush1.xpose.msra.mxu0 0.0
    %1064 = vmatprep.subr.mxu0 0.0
    %1065 = vmatpush1.xpose.msra.mxu0 0.0
    %1066 = vmatprep.subr.mxu0 0.0
    %1067 = vmatpush1.xpose.msra.mxu0 0.0
    %1068 = vmatprep.subr.mxu0 0.0
    %1069 = vmatpush1.xpose.msra.mxu0 0.0
    %1070 = vmatprep.subr.mxu0 0.0
    %1071 = vmatpush1.xpose.msra.mxu0 0.0
    %1072 = vmatprep.subr.mxu0 0.0
    %1073 = vmatpush1.xpose.msra.mxu0 0.0
    %1074 = vmatprep.subr.mxu0 0.0
    %1075 = vmatpush1.xpose.msra.mxu0 0.0
    %1076 = vmatprep.subr.mxu0 0.0
    %1077 = vmatpush1.xpose.msra.mxu0 0.0
    %1078 = vmatprep.subr.mxu0 0.0
    %1079 = vmatpush1.xpose.msra.mxu0 0.0
    %1080 = vmatprep.subr.mxu0 0.0
    %1081 = vmatpush1.xpose.msra.mxu0 0.0
    %1082 = vmatprep.subr.mxu0 0.0
    %1083 = vmatpush1.xpose.msra.mxu0 0.0
    %1084 = vmatprep.subr.mxu0 0.0
    %1085 = vmatpush1.xpose.msra.mxu0 0.0
    %1086 = vmatprep.mubr.f32.mxu0 0.0
    %1087 = vmatmul.mubr.f32.gmra.mrb[0].mxu0 %v1012
    %v1088 = vpop.f32.mrb[0].mxu0
    %v1089 = vadd.f32 0.0, %v1088
    %v1090 = vpop.f32.mrb[0].mxu0
    %1091 = vmatprep.mubr.f32.mxu0 0.0
    %1092 = vmatmul.mubr.f32.gmra.mrb[0].mxu0 %v1014
    %v1093 = vpop.f32.mrb[0].mxu0
    %v1094 = vadd.f32 0.0, %v1093
    %v1095 = vpop.f32.mrb[0].mxu0
    %1096 = vdwg.mxu0
    %v1097 = vmul.f32 %v913, %v199
    %v1098 = vmul.f32 %v918, %v200
    %v1099 = vmul.f32 %v998, %v199
    %v1100 = vmul.f32 %v1003, %v200
    %v1101 = vmul.f32 %v1089, %v199
    %v1102 = vmul.f32 %v1094, %v200
    %v1104 = vsel %vm205, %v1097, 0
    %v1107 = vsel %vm205, %v1098, 0
    %v1110 = vsel %vm205, %v1099, 0
    %v1113 = vsel %vm205, %v1100, 0
    %1115 = vmatprep.subr.mxu0 0.0
    %1116 = vmatpush1.xpose.msra.mxu0 %v1110
    %1117 = vmatprep.subr.mxu0 0.0
    %1118 = vmatpush1.xpose.msra.mxu0 %v1113
    %1119 = vmatprep.subr.mxu0 0.0
    %1120 = vmatpush1.xpose.msra.mxu0 0.0
    %1121 = vmatprep.subr.mxu0 0.0
    %1122 = vmatpush1.xpose.msra.mxu0 0.0
    %1123 = vmatprep.subr.mxu0 0.0
    %1124 = vmatpush1.xpose.msra.mxu0 0.0
    %1125 = vmatprep.subr.mxu0 0.0
    %1126 = vmatpush1.xpose.msra.mxu0 0.0
    %1127 = vmatprep.subr.mxu0 0.0
    %1128 = vmatpush1.xpose.msra.mxu0 0.0
    %1129 = vmatprep.subr.mxu0 0.0
    %1130 = vmatpush1.xpose.msra.mxu0 0.0
    %1131 = vmatprep.subr.mxu0 0.0
    %1132 = vmatpush1.xpose.msra.mxu0 0.0
    %1133 = vmatprep.subr.mxu0 0.0
    %1134 = vmatpush1.xpose.msra.mxu0 0.0
    %1135 = vmatprep.subr.mxu0 0.0
    %1136 = vmatpush1.xpose.msra.mxu0 0.0
    %1137 = vmatprep.subr.mxu0 0.0
    %1138 = vmatpush1.xpose.msra.mxu0 0.0
    %1139 = vmatprep.subr.mxu0 0.0
    %1140 = vmatpush1.xpose.msra.mxu0 0.0
    %1141 = vmatprep.subr.mxu0 0.0
    %1142 = vmatpush1.xpose.msra.mxu0 0.0
    %1143 = vmatprep.subr.mxu0 0.0
    %1144 = vmatpush1.xpose.msra.mxu0 0.0
    %1145 = vmatprep.subr.mxu0 0.0
    %1146 = vmatpush1.xpose.msra.mxu0 0.0
    %1147 = vmatprep.subr.mxu0 0.0
    %1148 = vmatpush1.xpose.msra.mxu0 0.0
    %1149 = vmatprep.subr.mxu0 0.0
    %1150 = vmatpush1.xpose.msra.mxu0 0.0
    %1151 = vmatprep.subr.mxu0 0.0
    %1152 = vmatpush1.xpose.msra.mxu0 0.0
    %1153 = vmatprep.subr.mxu0 0.0
    %1154 = vmatpush1.xpose.msra.mxu0 0.0
    %1155 = vmatprep.subr.mxu0 0.0
    %1156 = vmatpush1.xpose.msra.mxu0 0.0
    %1157 = vmatprep.subr.mxu0 0.0
    %1158 = vmatpush1.xpose.msra.mxu0 0.0
    %1159 = vmatprep.subr.mxu0 0.0
    %1160 = vmatpush1.xpose.msra.mxu0 0.0
    %1161 = vmatprep.subr.mxu0 0.0
    %1162 = vmatpush1.xpose.msra.mxu0 0.0
    %1163 = vmatprep.subr.mxu0 0.0
    %1164 = vmatpush1.xpose.msra.mxu0 0.0
    %1165 = vmatprep.subr.mxu0 0.0
    %1166 = vmatpush1.xpose.msra.mxu0 0.0
    %1167 = vmatprep.subr.mxu0 0.0
    %1168 = vmatpush1.xpose.msra.mxu0 0.0
    %1169 = vmatprep.subr.mxu0 0.0
    %1170 = vmatpush1.xpose.msra.mxu0 0.0
    %1171 = vmatprep.subr.mxu0 0.0
    %1172 = vmatpush1.xpose.msra.mxu0 0.0
    %1173 = vmatprep.subr.mxu0 0.0
    %1174 = vmatpush1.xpose.msra.mxu0 0.0
    %1175 = vmatprep.subr.mxu0 0.0
    %1176 = vmatpush1.xpose.msra.mxu0 0.0
    %1177 = vmatprep.subr.mxu0 0.0
    %1178 = vmatpush1.xpose.msra.mxu0 0.0
    %1179 = vmatprep.mubr.f32.mxu0 0.0
    %1180 = vmatmul.mubr.f32.gmra.mrb[0].mxu0 %v1104
    %v1181 = vpop.f32.mrb[0].mxu0
    %v1182 = vadd.f32 0.0, %v1181
    %v1183 = vpop.f32.mrb[0].mxu0
    %1184 = vmatprep.mubr.f32.mxu0 0.0
    %1185 = vmatmul.mubr.f32.gmra.mrb[0].mxu0 %v1107
    %v1186 = vpop.f32.mrb[0].mxu0
    %v1187 = vadd.f32 0.0, %v1186
    %v1188 = vpop.f32.mrb[0].mxu0
    %1189 = vdwg.mxu0
    %v1191 = vsel %vm205, %v1101, 0
    %v1194 = vsel %vm205, %v1102, 0
    %1196 = vmatprep.subr.mxu0 0.0
    %1197 = vmatpush1.msra.mxu0 %v98
    %1198 = vmatprep.subr.mxu0 0.0
    %1199 = vmatpush1.msra.mxu0 %v99
    %1200 = vmatprep.subr.mxu0 0.0
    %1201 = vmatpush1.msra.mxu0 0.0
    %1202 = vmatprep.subr.mxu0 0.0
    %1203 = vmatpush1.msra.mxu0 0.0
    %1204 = vmatprep.subr.mxu0 0.0
    %1205 = vmatpush1.msra.mxu0 0.0
    %1206 = vmatprep.subr.mxu0 0.0
    %1207 = vmatpush1.msra.mxu0 0.0
    %1208 = vmatprep.subr.mxu0 0.0
    %1209 = vmatpush1.msra.mxu0 0.0
    %1210 = vmatprep.subr.mxu0 0.0
    %1211 = vmatpush1.msra.mxu0 0.0
    %1212 = vmatprep.subr.mxu0 0.0
    %1213 = vmatpush1.msra.mxu0 0.0
    %1214 = vmatprep.subr.mxu0 0.0
    %1215 = vmatpush1.msra.mxu0 0.0
    %1216 = vmatprep.subr.mxu0 0.0
    %1217 = vmatpush1.msra.mxu0 0.0
    %1218 = vmatprep.subr.mxu0 0.0
    %1219 = vmatpush1.msra.mxu0 0.0
    %1220 = vmatprep.subr.mxu0 0.0
    %1221 = vmatpush1.msra.mxu0 0.0
    %1222 = vmatprep.subr.mxu0 0.0
    %1223 = vmatpush1.msra.mxu0 0.0
    %1224 = vmatprep.subr.mxu0 0.0
    %1225 = vmatpush1.msra.mxu0 0.0
    %1226 = vmatprep.subr.mxu0 0.0
    %1227 = vmatpush1.msra.mxu0 0.0
    %1228 = vmatprep.subr.mxu0 0.0
    %1229 = vmatpush1.msra.mxu0 0.0
    %1230 = vmatprep.subr.mxu0 0.0
    %1231 = vmatpush1.msra.mxu0 0.0
    %1232 = vmatprep.subr.mxu0 0.0
    %1233 = vmatpush1.msra.mxu0 0.0
    %1234 = vmatprep.subr.mxu0 0.0
    %1235 = vmatpush1.msra.mxu0 0.0
    %1236 = vmatprep.subr.mxu0 0.0
    %1237 = vmatpush1.msra.mxu0 0.0
    %1238 = vmatprep.subr.mxu0 0.0
    %1239 = vmatpush1.msra.mxu0 0.0
    %1240 = vmatprep.subr.mxu0 0.0
    %1241 = vmatpush1.msra.mxu0 0.0
    %1242 = vmatprep.subr.mxu0 0.0
    %1243 = vmatpush1.msra.mxu0 0.0
    %1244 = vmatprep.subr.mxu0 0.0
    %1245 = vmatpush1.msra.mxu0 0.0
    %1246 = vmatprep.subr.mxu0 0.0
    %1247 = vmatpush1.msra.mxu0 0.0
    %1248 = vmatprep.subr.mxu0 0.0
    %1249 = vmatpush1.msra.mxu0 0.0
    %1250 = vmatprep.subr.mxu0 0.0
    %1251 = vmatpush1.msra.mxu0 0.0
    %1252 = vmatprep.subr.mxu0 0.0
    %1253 = vmatpush1.msra.mxu0 0.0
    %1254 = vmatprep.subr.mxu0 0.0
    %1255 = vmatpush1.msra.mxu0 0.0
    %1256 = vmatprep.subr.mxu0 0.0
    %1257 = vmatpush1.msra.mxu0 0.0
    %1258 = vmatprep.subr.mxu0 0.0
    %1259 = vmatpush1.msra.mxu0 0.0
    %1260 = vmatprep.mubr.f32.mxu0 0.0
    %1261 = vmatmul.mubr.f32.gmra.mrb[0].mxu0 %v1191
    %v1262 = vpop.f32.mrb[0].mxu0
    %v1263 = vadd.f32 0.0, %v1262
    %v1264 = vpop.f32.mrb[0].mxu0
    %1265 = vmatprep.mubr.f32.mxu0 0.0
    %1266 = vmatmul.mubr.f32.gmra.mrb[0].mxu0 %v1194
    %v1267 = vpop.f32.mrb[0].mxu0
    %v1268 = vadd.f32 0.0, %v1267
    %v1269 = vpop.f32.mrb[0].mxu0
    %1270 = vdwg.mxu0
    %v1272 = vsel %vm205, %v1182, 0
    %v1275 = vsel %vm205, %v1187, 0
    %1277 = vmatprep.subr.mxu0 0.0
    %1278 = vmatpush1.msra.mxu0 %v1263
    %1279 = vmatprep.subr.mxu0 0.0
    %1280 = vmatpush1.msra.mxu0 %v1268
    %1281 = vmatprep.subr.mxu0 0.0
    %1282 = vmatpush1.msra.mxu0 0.0
    %1283 = vmatprep.subr.mxu0 0.0
    %1284 = vmatpush1.msra.mxu0 0.0
    %1285 = vmatprep.subr.mxu0 0.0
    %1286 = vmatpush1.msra.mxu0 0.0
    %1287 = vmatprep.subr.mxu0 0.0
    %1288 = vmatpush1.msra.mxu0 0.0
    %1289 = vmatprep.subr.mxu0 0.0
    %1290 = vmatpush1.msra.mxu0 0.0
    %1291 = vmatprep.subr.mxu0 0.0
    %1292 = vmatpush1.msra.mxu0 0.0
    %1293 = vmatprep.subr.mxu0 0.0
    %1294 = vmatpush1.msra.mxu0 0.0
    %1295 = vmatprep.subr.mxu0 0.0
    %1296 = vmatpush1.msra.mxu0 0.0
    %1297 = vmatprep.subr.mxu0 0.0
    %1298 = vmatpush1.msra.mxu0 0.0
    %1299 = vmatprep.subr.mxu0 0.0
    %1300 = vmatpush1.msra.mxu0 0.0
    %1301 = vmatprep.subr.mxu0 0.0
    %1302 = vmatpush1.msra.mxu0 0.0
    %1303 = vmatprep.subr.mxu0 0.0
    %1304 = vmatpush1.msra.mxu0 0.0
    %1305 = vmatprep.subr.mxu0 0.0
    %1306 = vmatpush1.msra.mxu0 0.0
    %1307 = vmatprep.subr.mxu0 0.0
    %1308 = vmatpush1.msra.mxu0 0.0
    %1309 = vmatprep.subr.mxu0 0.0
    %1310 = vmatpush1.msra.mxu0 0.0
    %1311 = vmatprep.subr.mxu0 0.0
    %1312 = vmatpush1.msra.mxu0 0.0
    %1313 = vmatprep.subr.mxu0 0.0
    %1314 = vmatpush1.msra.mxu0 0.0
    %1315 = vmatprep.subr.mxu0 0.0
    %1316 = vmatpush1.msra.mxu0 0.0
    %1317 = vmatprep.subr.mxu0 0.0
    %1318 = vmatpush1.msra.mxu0 0.0
    %1319 = vmatprep.subr.mxu0 0.0
    %1320 = vmatpush1.msra.mxu0 0.0
    %1321 = vmatprep.subr.mxu0 0.0
    %1322 = vmatpush1.msra.mxu0 0.0
    %1323 = vmatprep.subr.mxu0 0.0
    %1324 = vmatpush1.msra.mxu0 0.0
    %1325 = vmatprep.subr.mxu0 0.0
    %1326 = vmatpush1.msra.mxu0 0.0
    %1327 = vmatprep.subr.mxu0 0.0
    %1328 = vmatpush1.msra.mxu0 0.0
    %1329 = vmatprep.subr.mxu0 0.0
    %1330 = vmatpush1.msra.mxu0 0.0
    %1331 = vmatprep.subr.mxu0 0.0
    %1332 = vmatpush1.msra.mxu0 0.0
    %1333 = vmatprep.subr.mxu0 0.0
    %1334 = vmatpush1.msra.mxu0 0.0
    %1335 = vmatprep.subr.mxu0 0.0
    %1336 = vmatpush1.msra.mxu0 0.0
    %1337 = vmatprep.subr.mxu0 0.0
    %1338 = vmatpush1.msra.mxu0 0.0
    %1339 = vmatprep.subr.mxu0 0.0
    %1340 = vmatpush1.msra.mxu0 0.0
    %1341 = vmatprep.mubr.f32.mxu0 0.0
    %1342 = vmatmul.mubr.f32.gmra.mrb[0].mxu0 %v1272
    %v1343 = vpop.f32.mrb[0].mxu0
    %v1344 = vadd.f32 0.0, %v1343
    %v1345 = vpop.f32.mrb[0].mxu0
    %1346 = vmatprep.mubr.f32.mxu0 0.0
    %1347 = vmatmul.mubr.f32.gmra.mrb[0].mxu0 %v1275
    %v1348 = vpop.f32.mrb[0].mxu0
    %v1349 = vadd.f32 0.0, %v1348
    %v1350 = vpop.f32.mrb[0].mxu0
    %1351 = vdwg.mxu0
    %1352 = vst.msk [vmem:[#allocation11] sm:$0xff] %vm111, %v1344
    %1353 = vst.msk [vmem:[#allocation11 + $0x8] sm:$0xff] %vm111, %v1349
    // Predicated region
    $region54: #{multihead_attention_secondary.1} parent=1 // pred_check
      _
    $region55: #{multihead_attention_secondary.1} parent=1 // pred_check_branch
      %1355 = sbr.rel (0) target = $region57
    $region56: #{multihead_attention_secondary.1} parent=1 // pred_region
      %s1357 = ssub.s32 256, 256
      %1358 = vsyncadd [#allocation4], %s1357
      %s1359 = sshll.u32 [#allocation11], 4
      %s1360 = int_to_ptr.vmem [resolvable:$true] %s1359
      %1365 = dma.vmem_to_hbm [thread:$0]  %s1360, 256, %s8, [#allocation4], 128, 128, 8
    $region57: #{multihead_attention_secondary.1} parent=1 // pred_fallthru
      _
    // Predicated region
    $region58: #{multihead_attention_secondary.1} parent=1 // pred_check
      _
    $region59: #{multihead_attention_secondary.1} parent=1 // pred_check_branch
      %1367 = sbr.rel (0) target = $region61
    $region60: #{multihead_attention_secondary.1} parent=1 // pred_region
      %1368 = dma.done [#allocation4], 256
    $region61: #{multihead_attention_secondary.1} parent=1 // pred_fallthru
      _
    %1369 = vsyncpa [#allocation3], 1
    %1370 = vsyncpa [#allocation6], 1
    %1371 = vsyncpa [#allocation9], 1
    %1372 = vsyncpa [#allocation4], 1

</llo_original>
